<compile_context>
chip_gen: v7x
topology: tpu7x:2x2x1
jax: 0.10.0
libtpu: 0.0.40
codegen_flags: <defaults>
</compile_context>

<pallas_src>
import functools

import jax
import jax.numpy as jnp
from jax.experimental import pallas as pl
from jax.experimental.pallas import tpu as pltpu


def _round_up(a, m):
    return (a + m - 1) // m * m


def _vmem_capacity_bytes():
    try:
        return int(pltpu.get_tpu_info().vmem_capacity_bytes)
    except Exception:
        return 64 * 1024 * 1024  # assume the smallest generation (v7x) if unknown


def _patch_embed_kernel(x_ref, w_ref, b_ref, o_ref):
    # x_ref: (tm, K) token tile; w_ref: (K, tn); b_ref: (1, tn); o_ref: (tm, tn)
    acc = jnp.dot(x_ref[...], w_ref[...], preferred_element_type=jnp.float32)
    o_ref[...] = (acc + b_ref[...].astype(jnp.float32)).astype(o_ref.dtype)


@functools.partial(jax.jit, static_argnames=("patch_size", "tile_m"))
def _patch_embed_tokens(x_nchw, weight, bias, *, patch_size, tile_m=512):
    B, C, H, W = x_nchw.shape
    E = weight.shape[0]
    p = patch_size
    assert H % p == 0 and W % p == 0, "spatial dims must be divisible by patch"
    gh, gw = H // p, W // p
    N = B * gh * gw
    K = C * p * p
    itemsize = jnp.dtype(x_nchw.dtype).itemsize

    # im2col for a stride==kernel conv (one fused XLA copy under jit):
    # (B,C,H,W) -> (B,C,gh,p,gw,p) -> (B,gh,gw,C,p,p) -> (N, K), with the
    # (c, ph, pw) column order matching the flattened OIHW conv weight.
    tokens = x_nchw.reshape(B, C, gh, p, gw, p)
    tokens = jnp.transpose(tokens, (0, 2, 4, 1, 3, 5)).reshape(N, K)

    # Conv weight (E,C,p,p) -> GEMM weight (K,E); bias -> (1,E) lane-dense.
    w_mat = jnp.transpose(weight.reshape(E, K), (1, 0))
    b_mat = bias.reshape(1, E)

    # Lane-align the contraction dim (zero-pad K up to a multiple of 128).
    K_pad = _round_up(K, 128)
    if K_pad != K:
        tokens = jnp.pad(tokens, ((0, 0), (0, K_pad - K)))
        w_mat = jnp.pad(w_mat, ((0, K_pad - K), (0, 0)))

    # Row tiles: sublane packing is dtype dependent (f32: 8, bf16: 16, int8: 32).
    packing = max(8, 32 // itemsize)
    tm = min(tile_m, _round_up(N, packing))
    # Give v7x's two TensorCores at least one row tile each when possible.
    if _round_up(N, tm) // tm < 2 and N >= 2 * packing:
        tm = _round_up(pl.cdiv(N, 2), packing)

    # Embed-dim tiling: keep the whole K x E weight resident (fetched once)
    # when it fits a small budget; otherwise tile E lane-dense.
    weight_budget = 16 * 1024 * 1024
    if 2 * K_pad * E * itemsize <= weight_budget:
        tn = E
    else:
        tn = E
        for cand in (512, 256, 128):
            if E % cand == 0:
                tn = cand
                break

    # Shrink the row tile if the double-buffered working set would be too big.
    def working_set(tm_, tok_bufs):
        return (tok_bufs * tm_ * K_pad      # streaming token tiles
                + 2 * K_pad * tn            # weight
                + 2 * 8 * tn                # bias (1 row pads to 8 sublanes)
                + 2 * tm_ * tn) * itemsize  # output tiles

    while tm > packing and working_set(tm, 2) > 24 * 1024 * 1024:
        tm = max(packing, _round_up(tm // 2, packing))

    n_pad = _round_up(N, tm)
    if n_pad != N:
        tokens = jnp.pad(tokens, ((0, n_pad - N), (0, 0)))
    num_row_tiles = n_pad // tm

    tok_bufs = 3 if (tn == E and num_row_tiles >= 3) else 2
    need = working_set(tm, tok_bufs) + 4 * 1024 * 1024  # + compiler scratch headroom
    vmem_limit = int(min(max(need, 16 * 1024 * 1024),
                         _vmem_capacity_bytes() * 3 // 4))

    if tn == E:
        # Weight-resident path: 1-D grid over row tiles; weight/bias DMA'd once.
        grid = (num_row_tiles,)
        if tok_bufs == 3:
            # Deeper pipelining on the one streaming input (v5e DMA hiding).
            tok_spec = pl.BlockSpec((tm, K_pad), lambda i: (i, 0),
                                    pipeline_mode=pl.Buffered(3))
        else:
            tok_spec = pl.BlockSpec((tm, K_pad), lambda i: (i, 0))
        in_specs = [
            tok_spec,
            pl.BlockSpec((K_pad, E), lambda i: (0, 0)),   # weight: constant block
            pl.BlockSpec((1, E), lambda i: (0, 0)),       # bias: constant block
        ]
        out_specs = pl.BlockSpec((tm, E), lambda i: (i, 0))
        dim_sem = ("parallel",)
    else:
        # Column (embed) axis outer/slow so the weight block stays constant
        # across the inner row sweep.
        grid = (E // tn, num_row_tiles)
        in_specs = [
            pl.BlockSpec((tm, K_pad), lambda j, i: (i, 0)),
            pl.BlockSpec((K_pad, tn), lambda j, i: (0, j)),
            pl.BlockSpec((1, tn), lambda j, i: (0, j)),
        ]
        out_specs = pl.BlockSpec((tm, tn), lambda j, i: (i, j))
        dim_sem = ("parallel", "parallel")

    out = pl.pallas_call(
        _patch_embed_kernel,
        out_shape=jax.ShapeDtypeStruct((n_pad, E), x_nchw.dtype),
        grid_spec=pltpu.PrefetchScalarGridSpec(
            num_scalar_prefetch=0,
            grid=grid,
            in_specs=in_specs,
            out_specs=out_specs,
        ),
        compiler_params=pltpu.CompilerParams(
            dimension_semantics=dim_sem,
            vmem_limit_bytes=vmem_limit,
        ),
    )(tokens, w_mat, b_mat)

    return out[:N].reshape(B, gh * gw, E)


def patch_embed_forward(x_nchw, weight, bias, patch_size, *, tile_m=512):
    """Pallas patch embedding.

    x_nchw : (B, C, H, W)
    weight : (E, C, p, p)   (PyTorch Conv2d OIHW layout)
    bias   : (E,)
    Returns (tokens (B, H_*W_, E), (H_, W_)).
    """
    gh = x_nchw.shape[2] // patch_size
    gw = x_nchw.shape[3] // patch_size
    out = _patch_embed_tokens(x_nchw, weight, bias,
                              patch_size=patch_size, tile_m=tile_m)
    return out, (gh, gw)


def patch_embed_reference(x_nchw, weight, bias, patch_size):
    """Pure-JAX reference matching the PyTorch module (Conv2d + flatten + transpose)."""
    y = jax.lax.conv_general_dilated(
        x_nchw, weight,
        window_strides=(patch_size, patch_size),
        padding="VALID",
        dimension_numbers=("NCHW", "OIHW", "NCHW"),
    )
    y = y + bias.reshape(1, -1, 1, 1)
    B, E, Hc, Wc = y.shape
    return jnp.transpose(y.reshape(B, E, Hc * Wc), (0, 2, 1)), (Hc, Wc)


def init_params(key, in_c, embed_dim, patch_size):
    kw, kb = jax.random.split(key)
    weight = jax.random.normal(kw, (embed_dim, in_c, patch_size, patch_size),
                               jnp.float32) * 0.02
    bias = jax.random.normal(kb, (embed_dim,), jnp.float32) * 0.02
    return weight, bias


if __name__ == "__main__":
    key = jax.random.PRNGKey(0)
    kx, kp = jax.random.split(key)

    # Module defaults (already small): img_size=8, patch_size=2, in_c=256, embed_dim=768.
    B, C, H, W = 2, 256, 8, 8
    patch = 2
    embed_dim = 768

    x = jax.random.normal(kx, (B, C, H, W), jnp.float32)
    weight, bias = init_params(kp, C, embed_dim, patch)

    out, (H_, W_) = patch_embed_forward(x, weight, bias, patch)
    out = jax.block_until_ready(out)

    ref, (Hr, Wr) = patch_embed_reference(x, weight, bias, patch)

    assert out.shape == (B, (H // patch) * (W // patch), embed_dim)
    assert (H_, W_) == (Hr, Wr) == (H // patch, W // patch)
    assert jnp.allclose(out, ref, atol=2e-3, rtol=2e-3), "mismatch vs reference"

    print("KERNEL_OK")
</pallas_src>

<mosaic_0001>
module attributes {stable_mosaic.version = 11 : i64} {
  func.func @_patch_embed_kernel(%arg0: i32, %arg1: memref<16x1024xf32, #tpu.memory_space<vmem>>, %arg2: memref<1024x768xf32, #tpu.memory_space<vmem>>, %arg3: memref<1x768xf32, #tpu.memory_space<vmem>>, %arg4: memref<16x768xf32, #tpu.memory_space<vmem>>) attributes {dimension_semantics = [#tpu.dimension_semantics<parallel>], iteration_bounds = array<i64: 2>, scalar_prefetch = 0 : i64, scratch_operands = 0 : i64, tpu.core_type = #tpu.core_type<tc>, window_params = [{transform_indices = @transform_0, window_bounds = array<i64: 16, 1024>}, {pipeline_mode = #tpu.pipeline_mode<synchronous>, transform_indices = @transform_1, window_bounds = array<i64: 1024, 768>}, {pipeline_mode = #tpu.pipeline_mode<synchronous>, transform_indices = @transform_2, window_bounds = array<i64: 1, 768>}, {transform_indices = @transform_3, window_bounds = array<i64: 16, 768>}]} {
    %c0 = arith.constant 0 : index
    %c0_0 = arith.constant 0 : index
    %0 = vector.load %arg1[%c0, %c0_0] : memref<16x1024xf32, #tpu.memory_space<vmem>>, vector<16x1024xf32>
    %c0_1 = arith.constant 0 : index
    %c0_2 = arith.constant 0 : index
    %1 = vector.load %arg2[%c0_1, %c0_2] : memref<1024x768xf32, #tpu.memory_space<vmem>>, vector<1024x768xf32>
    %cst = arith.constant dense<0.000000e+00> : vector<16x768xf32>
    %2 = tpu.matmul %0, %1, %cst {dimension_numbers = #tpu.dot_dimension_numbers<[1], [0], [0], [1], [0, 0, 1, 1], [], []>} : vector<16x1024xf32>, vector<1024x768xf32>, vector<16x768xf32> -> vector<16x768xf32>
    %c0_3 = arith.constant 0 : index
    %c0_4 = arith.constant 0 : index
    %3 = vector.load %arg3[%c0_3, %c0_4] : memref<1x768xf32, #tpu.memory_space<vmem>>, vector<1x768xf32>
    %4 = vector.broadcast %3 : vector<1x768xf32> to vector<16x768xf32>
    %5 = arith.addf %2, %4 : vector<16x768xf32>
    %c0_5 = arith.constant 0 : index
    %c0_6 = arith.constant 0 : index
    %6 = vector.load %arg4[%c0_5, %c0_6] : memref<16x768xf32, #tpu.memory_space<vmem>>, vector<16x768xf32>
    tpu.vector_store %arg4[%c0_5, %c0_6], %5 {strides = array<i32>} : memref<16x768xf32, #tpu.memory_space<vmem>>, vector<16x768xf32>,
    return
  }
  func.func @transform_0(%arg0: i32) -> (i32, i32) {
    %c0_i32 = arith.constant 0 : i32
    %c0_i32_0 = arith.constant 0 : i32
    return %arg0, %c0_i32 : i32, i32
  }
  func.func @transform_1(%arg0: i32) -> (i32, i32) {
    %c0_i32 = arith.constant 0 : i32
    %c0_i32_0 = arith.constant 0 : i32
    %c0_i32_1 = arith.constant 0 : i32
    return %c0_i32, %c0_i32_0 : i32, i32
  }
  func.func @transform_2(%arg0: i32) -> (i32, i32) {
    %c0_i32 = arith.constant 0 : i32
    %c0_i32_0 = arith.constant 0 : i32
    %c0_i32_1 = arith.constant 0 : i32
    return %c0_i32, %c0_i32_0 : i32, i32
  }
  func.func @transform_3(%arg0: i32) -> (i32, i32) {
    %c0_i32 = arith.constant 0 : i32
    %c0_i32_0 = arith.constant 0 : i32
    return %arg0, %c0_i32 : i32, i32
  }
}

</mosaic_0001>

<llo_original>
// kernel: _patch_embed_tokens.1
$region0: #{_patch_embed_tokens.1}
  #allocation0 [shape = 'u32[]', space=smem, size = 0x4, offset = 0x4, fixed_abs, tag = 'smem constant byte address 0x4 - core index']
  #allocation1 [shape = 'u32[144,128]{1,0:T(1,128)}', space=vmem, size = 0x12000, scoped, tag = 'internal scratch']
  %s0 = inlined_call_operand.vmem [shape: f32[32,1024], index: 0, kind: input, shape index: {}]
  %s1 = inlined_call_operand.vmem [shape: f32[1024,768], index: 1, kind: input, shape index: {}]
  %s2 = inlined_call_operand.vmem [shape: f32[1,768], index: 2, kind: input, shape index: {}]
  %s3 = inlined_call_operand.hbm [shape: f32[32,768], index: 3, kind: output, shape index: {}]
  %s4 = sld [smem:[#allocation0]]
  $region45: #{_patch_embed_tokens.1} parent=0
    _
  %s6 = ssub.s32 1, %s4
  %s7 = scalar_select 0, %s6, %s4
  $region1: #{_patch_embed_tokens.1} parent=0
    #allocation2 [shape = 'u8[98304]{0}', space=vmem, size = 0x18000, scoped, tag = 'output window, operand 0']
    #allocation3 [shape = 's32[2]{0}', space=sflag, size = 0x8, scoped, tag = 'scoped memory for _patch_embed_tokens.1']
    %8 = vsyncpa [#allocation3], 0
    %s9 = scalar_lea.sflag [#allocation3], 1
    %10 = vsyncpa %s9, 0
    loop: start=0, step=1, limit=4
    $region2: #{_patch_embed_tokens.1} parent=1 // loop_pre_header
      _
    $region3: #{_patch_embed_tokens.1} parent=1 // loop_header
      %s12 = sphi 0, %s16
      %p13 = scmp.ge.s32.totalorder %s12, 4
      %s22 = sphi 0, %s24
      %s25 = sphi 0, %s22
      %s26 = sphi 0, %s25
      %s42 = sphi 0, %s26
      %s46 = sphi 0, %s46
      %s48 = sphi 0, %s46
      %s49 = sphi 0, %s48
      %s63 = sphi 0, %s49
      %s67 = sphi 0, %s67
      %s69 = sphi 0, %s67
      %s70 = sphi 0, %s69
      %s84 = sphi 0, %s70
      %s90 = sphi 0, %s92
      %s93 = sphi 0, %s90
      %s94 = sphi 0, %s93
      %s110 = sphi 0, %s94
    $region4: #{_patch_embed_tokens.1} parent=1 // loop_header_branch
      %15 = sbr.rel (%p13) target = $region8
    $region5: #{_patch_embed_tokens.1} parent=1 // loop_body
      %s17 = ssub.s32 %s12, 1
      %s18 = ssub.s32 %s12, 2
      %s19 = sadd.s32 %s12, 1
      %s20 = ssub.s32 %s12, %s19
      %p21 = scmp.eq.s32.totalorder %s20, 0
      %s23 = sadd.s32 %s22, 1
      %s24 = scalar_select %p21, %s22, %s23
      %p27 = pneg %p21
      %p28 = scmp.eq.s32.totalorder %s12, 1
      %p29 = por %p27, %p28
      %p30 = scmp.ne.s32.totalorder %s22, %s25
      %p31 = scmp.eq.s32.totalorder %s12, 0
      %p32 = por %p30, %p31
      %p33 = scmp.ne.s32.totalorder %s22, %s25
      %p34 = scmp.eq.s32.totalorder %s17, 1
      %p35 = por %p33, %p34
      %p36 = scmp.ne.s32.totalorder %s25, %s26
      %p37 = scmp.eq.s32.totalorder %s17, 0
      %p38 = por %p36, %p37
      %p39 = scmp.ne.s32.totalorder %s25, %s26
      %p40 = scmp.eq.s32.totalorder %s18, 1
      %p41 = por %p39, %p40
      %p43 = scmp.ne.s32.totalorder %s26, %s42
      %p44 = scmp.eq.s32.totalorder %s18, 0
      %p45 = por %p43, %p44
      %s47 = sadd.s32 %s46, 1
      %p50 = scmp.eq.s32.totalorder %s12, 1
      %p51 = scmp.ne.s32.totalorder %s46, %s48
      %p52 = scmp.eq.s32.totalorder %s12, 0
      %p53 = por %p51, %p52
      %p54 = scmp.ne.s32.totalorder %s46, %s48
      %p55 = scmp.eq.s32.totalorder %s17, 1
      %p56 = por %p54, %p55
      %p57 = scmp.ne.s32.totalorder %s48, %s49
      %p58 = scmp.eq.s32.totalorder %s17, 0
      %p59 = por %p57, %p58
      %p60 = scmp.ne.s32.totalorder %s48, %s49
      %p61 = scmp.eq.s32.totalorder %s18, 1
      %p62 = por %p60, %p61
      %p64 = scmp.ne.s32.totalorder %s49, %s63
      %p65 = scmp.eq.s32.totalorder %s18, 0
      %p66 = por %p64, %p65
      %s68 = sadd.s32 %s67, 1
      %p71 = scmp.eq.s32.totalorder %s12, 1
      %p72 = scmp.ne.s32.totalorder %s67, %s69
      %p73 = scmp.eq.s32.totalorder %s12, 0
      %p74 = por %p72, %p73
      %p75 = scmp.ne.s32.totalorder %s67, %s69
      %p76 = scmp.eq.s32.totalorder %s17, 1
      %p77 = por %p75, %p76
      %p78 = scmp.ne.s32.totalorder %s69, %s70
      %p79 = scmp.eq.s32.totalorder %s17, 0
      %p80 = por %p78, %p79
      %p81 = scmp.ne.s32.totalorder %s69, %s70
      %p82 = scmp.eq.s32.totalorder %s18, 1
      %p83 = por %p81, %p82
      %p85 = scmp.ne.s32.totalorder %s70, %s84
      %p86 = scmp.eq.s32.totalorder %s18, 0
      %p87 = por %p85, %p86
      %s88 = ssub.s32 %s12, %s19
      %p89 = scmp.eq.s32.totalorder %s88, 0
      %s91 = sadd.s32 %s90, 1
      %s92 = scalar_select %p89, %s90, %s91
      %p95 = pneg %p89
      %p96 = scmp.eq.s32.totalorder %s12, 1
      %p97 = por %p95, %p96
      %p98 = scmp.ne.s32.totalorder %s90, %s93
      %p99 = scmp.eq.s32.totalorder %s12, 0
      %p100 = por %p98, %p99
      %p101 = scmp.ne.s32.totalorder %s90, %s93
      %p102 = scmp.eq.s32.totalorder %s17, 1
      %p103 = por %p101, %p102
      %p104 = scmp.ne.s32.totalorder %s93, %s94
      %p105 = scmp.eq.s32.totalorder %s17, 0
      %p106 = por %p104, %p105
      %p107 = scmp.ne.s32.totalorder %s93, %s94
      %p108 = scmp.eq.s32.totalorder %s18, 1
      %p109 = por %p107, %p108
      %p111 = scmp.ne.s32.totalorder %s94, %s110
      %p112 = scmp.eq.s32.totalorder %s18, 0
      %p113 = por %p111, %p112
      %p114 = scmp.le.s32.totalorder 1, %s12
      %p115 = scmp.lt.s32.totalorder %s12, 3
      %p116 = pnand %p114, %p115
      %p117 = pneg %p116
      // Predicated region
      $region9: #{_patch_embed_tokens.1} parent=5 // pred_check
        _
      $region10: #{_patch_embed_tokens.1} parent=5 // pred_check_branch
        %119 = sbr.rel (%p116) target = $region12
      $region11: #{_patch_embed_tokens.1} parent=5 // pred_region
        %s120 = ssub.s32 %s12, 1
        // Predicated region
        $region13: #{_patch_embed_tokens.1} parent=11 // pred_check
          %p121 = pneg %p59
        $region14: #{_patch_embed_tokens.1} parent=11 // pred_check_branch
          %123 = sbr.rel (%p121) target = $region16
        $region15: #{_patch_embed_tokens.1} parent=11 // pred_region
          _
        $region16: #{_patch_embed_tokens.1} parent=11 // pred_fallthru
          _
        // Predicated region
        $region17: #{_patch_embed_tokens.1} parent=11 // pred_check
          %p124 = pneg %p80
        $region18: #{_patch_embed_tokens.1} parent=11 // pred_check_branch
          %126 = sbr.rel (%p124) target = $region20
        $region19: #{_patch_embed_tokens.1} parent=11 // pred_region
          _
        $region20: #{_patch_embed_tokens.1} parent=11 // pred_fallthru
          _
      $region12: #{_patch_embed_tokens.1} parent=5 // pred_fallthru
        _
      %p127 = scmp.lt.s32.totalorder %s12, 2
      // Predicated region
      $region21: #{_patch_embed_tokens.1} parent=5 // pred_check
        %p128 = pneg %p127
      $region22: #{_patch_embed_tokens.1} parent=5 // pred_check_branch
        %130 = sbr.rel (%p128) target = $region24
      $region23: #{_patch_embed_tokens.1} parent=5 // pred_region
        // Predicated region
        $region25: #{_patch_embed_tokens.1} parent=23 // pred_check
          %p131 = pneg %p32
        $region26: #{_patch_embed_tokens.1} parent=23 // pred_check_branch
          %133 = sbr.rel (%p131) target = $region28
        $region27: #{_patch_embed_tokens.1} parent=23 // pred_region
          %s134 = smul.u32 2, %s12
          %p135 = scmp.lt.s32.totalorder %s134, 3
          %s136 = scalar_select %p135, %s134, 3
          %s137 = smul.addr %s136, 8
          %s138 = smul.addr %s137, 8
          %s139 = scalar_lea.vmem %s0, %s138
          %s140 = smul.u32 2, %s12
        $region28: #{_patch_embed_tokens.1} parent=23 // pred_fallthru
          _
      $region24: #{_patch_embed_tokens.1} parent=5 // pred_fallthru
        _
      %p141 = scmp.le.s32.totalorder 1, %s12
      %p142 = scmp.lt.s32.totalorder %s12, 3
      %p143 = pnand %p141, %p142
      %p144 = pneg %p143
      // Predicated region
      $region29: #{_patch_embed_tokens.1} parent=5 // pred_check
        _
      $region30: #{_patch_embed_tokens.1} parent=5 // pred_check_branch
        %146 = sbr.rel (%p143) target = $region32
      $region31: #{_patch_embed_tokens.1} parent=5 // pred_region
        %s147 = ssub.s32 %s12, 1
        %s148 = smul.u32 2, %s17
        %p149 = scmp.lt.s32.totalorder %s148, 3
        %s150 = scalar_select %p149, %s148, 3
        %s151 = smul.addr %s150, 8
        %s152 = smul.addr %s151, 8
        %s153 = scalar_lea.vmem %s0, %s152
        %p154 = pneg %p38
        %p155 = pneg %p35
        %p156 = pneg %p59
        %p157 = pneg %p56
        %p158 = pneg %p80
        %p159 = pneg %p77
        %p160 = pneg %p106
        %p161 = pneg %p103
        %s162 = sand.u32 %s93, 1
        %s163 = scalar_lea.sflag [#allocation3], %s162
        %s164 = sand.u32 %s93, 1
        %s165 = smul.addr %s164, 96
        %s166 = scalar_lea.vmem [#allocation2], %s165
        %s167 = smul.u32 2, %s17
        %p168 = scmp.lt.s32.totalorder %s167, 3
        %s169 = scalar_select %p168, %s167, 3
        %s170 = smul.addr %s169, 8
        %s171 = smul.addr %s170, 8
        %s172 = scalar_lea.vmem %s0, %s171
        %s173 = smul.u32 2, %s17
        %s174 = smul.u32 2, %s17
        %v175 = vld [vmem:[%s172] sm:$0xff]
        %v176 = vld [vmem:[%s172 + $0x8] sm:$0xff]
        %v177 = vld [vmem:[%s172 + $0x10] sm:$0xff]
        %v178 = vld [vmem:[%s172 + $0x18] sm:$0xff]
        %v179 = vld [vmem:[%s172 + $0x20] sm:$0xff]
        %v180 = vld [vmem:[%s172 + $0x28] sm:$0xff]
        %v181 = vld [vmem:[%s172 + $0x30] sm:$0xff]
        %v182 = vld [vmem:[%s172 + $0x38] sm:$0xff]
        %v183 = vld [vmem:[%s172 + $0x40] sm:$0xff]
        %v184 = vld [vmem:[%s172 + $0x48] sm:$0xff]
        %v185 = vld [vmem:[%s172 + $0x50] sm:$0xff]
        %v186 = vld [vmem:[%s172 + $0x58] sm:$0xff]
        %v187 = vld [vmem:[%s172 + $0x60] sm:$0xff]
        %v188 = vld [vmem:[%s172 + $0x68] sm:$0xff]
        %v189 = vld [vmem:[%s172 + $0x70] sm:$0xff]
        %v190 = vld [vmem:[%s172 + $0x78] sm:$0xff]
        %v191 = vld [vmem:[%s1] sm:$0xff]
        %v192 = vld [vmem:[%s1 + $0x8] sm:$0xff]
        %v193 = vld [vmem:[%s1 + $0x10] sm:$0xff]
        %v194 = vld [vmem:[%s1 + $0x18] sm:$0xff]
        %v195 = vld [vmem:[%s1 + $0x20] sm:$0xff]
        %v196 = vld [vmem:[%s1 + $0x28] sm:$0xff]
        %v197 = vld [vmem:[%s1 + $0x30] sm:$0xff]
        %v198 = vld [vmem:[%s1 + $0x38] sm:$0xff]
        %v199 = vld [vmem:[%s1 + $0x40] sm:$0xff]
        %v200 = vld [vmem:[%s1 + $0x48] sm:$0xff]
        %v201 = vld [vmem:[%s1 + $0x50] sm:$0xff]
        %v202 = vld [vmem:[%s1 + $0x58] sm:$0xff]
        %v203 = vld [vmem:[%s1 + $0x60] sm:$0xff]
        %v204 = vld [vmem:[%s1 + $0x68] sm:$0xff]
        %v205 = vld [vmem:[%s1 + $0x70] sm:$0xff]
        %v206 = vld [vmem:[%s1 + $0x78] sm:$0xff]
        %v207 = vld [vmem:[%s1 + $0x80] sm:$0xff]
        %v208 = vld [vmem:[%s1 + $0x88] sm:$0xff]
        %v209 = vld [vmem:[%s1 + $0x90] sm:$0xff]
        %v210 = vld [vmem:[%s1 + $0x98] sm:$0xff]
        %v211 = vld [vmem:[%s1 + $0xa0] sm:$0xff]
        %v212 = vld [vmem:[%s1 + $0xa8] sm:$0xff]
        %v213 = vld [vmem:[%s1 + $0xb0] sm:$0xff]
        %v214 = vld [vmem:[%s1 + $0xb8] sm:$0xff]
        %v215 = vld [vmem:[%s1 + $0xc0] sm:$0xff]
        %v216 = vld [vmem:[%s1 + $0xc8] sm:$0xff]
        %v217 = vld [vmem:[%s1 + $0xd0] sm:$0xff]
        %v218 = vld [vmem:[%s1 + $0xd8] sm:$0xff]
        %v219 = vld [vmem:[%s1 + $0xe0] sm:$0xff]
        %v220 = vld [vmem:[%s1 + $0xe8] sm:$0xff]
        %v221 = vld [vmem:[%s1 + $0xf0] sm:$0xff]
        %v222 = vld [vmem:[%s1 + $0xf8] sm:$0xff]
        %v223 = vld [vmem:[%s1 + $0x100] sm:$0xff]
        %v224 = vld [vmem:[%s1 + $0x108] sm:$0xff]
        %v225 = vld [vmem:[%s1 + $0x110] sm:$0xff]
        %v226 = vld [vmem:[%s1 + $0x118] sm:$0xff]
        %v227 = vld [vmem:[%s1 + $0x120] sm:$0xff]
        %v228 = vld [vmem:[%s1 + $0x128] sm:$0xff]
        %v229 = vld [vmem:[%s1 + $0x130] sm:$0xff]
        %v230 = vld [vmem:[%s1 + $0x138] sm:$0xff]
        %v231 = vld [vmem:[%s1 + $0x140] sm:$0xff]
        %v232 = vld [vmem:[%s1 + $0x148] sm:$0xff]
        %v233 = vld [vmem:[%s1 + $0x150] sm:$0xff]
        %v234 = vld [vmem:[%s1 + $0x158] sm:$0xff]
        %v235 = vld [vmem:[%s1 + $0x160] sm:$0xff]
        %v236 = vld [vmem:[%s1 + $0x168] sm:$0xff]
        %v237 = vld [vmem:[%s1 + $0x170] sm:$0xff]
        %v238 = vld [vmem:[%s1 + $0x178] sm:$0xff]
        %v239 = vld [vmem:[%s1 + $0x180] sm:$0xff]
        %v240 = vld [vmem:[%s1 + $0x188] sm:$0xff]
        %v241 = vld [vmem:[%s1 + $0x190] sm:$0xff]
        %v242 = vld [vmem:[%s1 + $0x198] sm:$0xff]
        %v243 = vld [vmem:[%s1 + $0x1a0] sm:$0xff]
        %v244 = vld [vmem:[%s1 + $0x1a8] sm:$0xff]
        %v245 = vld [vmem:[%s1 + $0x1b0] sm:$0xff]
        %v246 = vld [vmem:[%s1 + $0x1b8] sm:$0xff]
        %v247 = vld [vmem:[%s1 + $0x1c0] sm:$0xff]
        %v248 = vld [vmem:[%s1 + $0x1c8] sm:$0xff]
        %v249 = vld [vmem:[%s1 + $0x1d0] sm:$0xff]
        %v250 = vld [vmem:[%s1 + $0x1d8] sm:$0xff]
        %v251 = vld [vmem:[%s1 + $0x1e0] sm:$0xff]
        %v252 = vld [vmem:[%s1 + $0x1e8] sm:$0xff]
        %v253 = vld [vmem:[%s1 + $0x1f0] sm:$0xff]
        %v254 = vld [vmem:[%s1 + $0x1f8] sm:$0xff]
        %v255 = vld [vmem:[%s1 + $0x200] sm:$0xff]
        %v256 = vld [vmem:[%s1 + $0x208] sm:$0xff]
        %v257 = vld [vmem:[%s1 + $0x210] sm:$0xff]
        %v258 = vld [vmem:[%s1 + $0x218] sm:$0xff]
        %v259 = vld [vmem:[%s1 + $0x220] sm:$0xff]
        %v260 = vld [vmem:[%s1 + $0x228] sm:$0xff]
        %v261 = vld [vmem:[%s1 + $0x230] sm:$0xff]
        %v262 = vld [vmem:[%s1 + $0x238] sm:$0xff]
        %v263 = vld [vmem:[%s1 + $0x240] sm:$0xff]
        %v264 = vld [vmem:[%s1 + $0x248] sm:$0xff]
        %v265 = vld [vmem:[%s1 + $0x250] sm:$0xff]
        %v266 = vld [vmem:[%s1 + $0x258] sm:$0xff]
        %v267 = vld [vmem:[%s1 + $0x260] sm:$0xff]
        %v268 = vld [vmem:[%s1 + $0x268] sm:$0xff]
        %v269 = vld [vmem:[%s1 + $0x270] sm:$0xff]
        %v270 = vld [vmem:[%s1 + $0x278] sm:$0xff]
        %v271 = vld [vmem:[%s1 + $0x280] sm:$0xff]
        %v272 = vld [vmem:[%s1 + $0x288] sm:$0xff]
        %v273 = vld [vmem:[%s1 + $0x290] sm:$0xff]
        %v274 = vld [vmem:[%s1 + $0x298] sm:$0xff]
        %v275 = vld [vmem:[%s1 + $0x2a0] sm:$0xff]
        %v276 = vld [vmem:[%s1 + $0x2a8] sm:$0xff]
        %v277 = vld [vmem:[%s1 + $0x2b0] sm:$0xff]
        %v278 = vld [vmem:[%s1 + $0x2b8] sm:$0xff]
        %v279 = vld [vmem:[%s1 + $0x2c0] sm:$0xff]
        %v280 = vld [vmem:[%s1 + $0x2c8] sm:$0xff]
        %v281 = vld [vmem:[%s1 + $0x2d0] sm:$0xff]
        %v282 = vld [vmem:[%s1 + $0x2d8] sm:$0xff]
        %v283 = vld [vmem:[%s1 + $0x2e0] sm:$0xff]
        %v284 = vld [vmem:[%s1 + $0x2e8] sm:$0xff]
        %v285 = vld [vmem:[%s1 + $0x2f0] sm:$0xff]
        %v286 = vld [vmem:[%s1 + $0x2f8] sm:$0xff]
        %v287 = vld [vmem:[%s1 + $0x300] sm:$0xff]
        %v288 = vld [vmem:[%s1 + $0x308] sm:$0xff]
        %v289 = vld [vmem:[%s1 + $0x310] sm:$0xff]
        %v290 = vld [vmem:[%s1 + $0x318] sm:$0xff]
        %v291 = vld [vmem:[%s1 + $0x320] sm:$0xff]
        %v292 = vld [vmem:[%s1 + $0x328] sm:$0xff]
        %v293 = vld [vmem:[%s1 + $0x330] sm:$0xff]
        %v294 = vld [vmem:[%s1 + $0x338] sm:$0xff]
        %v295 = vld [vmem:[%s1 + $0x340] sm:$0xff]
        %v296 = vld [vmem:[%s1 + $0x348] sm:$0xff]
        %v297 = vld [vmem:[%s1 + $0x350] sm:$0xff]
        %v298 = vld [vmem:[%s1 + $0x358] sm:$0xff]
        %v299 = vld [vmem:[%s1 + $0x360] sm:$0xff]
        %v300 = vld [vmem:[%s1 + $0x368] sm:$0xff]
        %v301 = vld [vmem:[%s1 + $0x370] sm:$0xff]
        %v302 = vld [vmem:[%s1 + $0x378] sm:$0xff]
        %v303 = vld [vmem:[%s1 + $0x380] sm:$0xff]
        %v304 = vld [vmem:[%s1 + $0x388] sm:$0xff]
        %v305 = vld [vmem:[%s1 + $0x390] sm:$0xff]
        %v306 = vld [vmem:[%s1 + $0x398] sm:$0xff]
        %v307 = vld [vmem:[%s1 + $0x3a0] sm:$0xff]
        %v308 = vld [vmem:[%s1 + $0x3a8] sm:$0xff]
        %v309 = vld [vmem:[%s1 + $0x3b0] sm:$0xff]
        %v310 = vld [vmem:[%s1 + $0x3b8] sm:$0xff]
        %v311 = vld [vmem:[%s1 + $0x3c0] sm:$0xff]
        %v312 = vld [vmem:[%s1 + $0x3c8] sm:$0xff]
        %v313 = vld [vmem:[%s1 + $0x3d0] sm:$0xff]
        %v314 = vld [vmem:[%s1 + $0x3d8] sm:$0xff]
        %v315 = vld [vmem:[%s1 + $0x3e0] sm:$0xff]
        %v316 = vld [vmem:[%s1 + $0x3e8] sm:$0xff]
        %v317 = vld [vmem:[%s1 + $0x3f0] sm:$0xff]
        %v318 = vld [vmem:[%s1 + $0x3f8] sm:$0xff]
        %v319 = vld [vmem:[%s1 + $0x400] sm:$0xff]
        %v320 = vld [vmem:[%s1 + $0x408] sm:$0xff]
        %v321 = vld [vmem:[%s1 + $0x410] sm:$0xff]
        %v322 = vld [vmem:[%s1 + $0x418] sm:$0xff]
        %v323 = vld [vmem:[%s1 + $0x420] sm:$0xff]
        %v324 = vld [vmem:[%s1 + $0x428] sm:$0xff]
        %v325 = vld [vmem:[%s1 + $0x430] sm:$0xff]
        %v326 = vld [vmem:[%s1 + $0x438] sm:$0xff]
        %v327 = vld [vmem:[%s1 + $0x440] sm:$0xff]
        %v328 = vld [vmem:[%s1 + $0x448] sm:$0xff]
        %v329 = vld [vmem:[%s1 + $0x450] sm:$0xff]
        %v330 = vld [vmem:[%s1 + $0x458] sm:$0xff]
        %v331 = vld [vmem:[%s1 + $0x460] sm:$0xff]
        %v332 = vld [vmem:[%s1 + $0x468] sm:$0xff]
        %v333 = vld [vmem:[%s1 + $0x470] sm:$0xff]
        %v334 = vld [vmem:[%s1 + $0x478] sm:$0xff]
        %v335 = vld [vmem:[%s1 + $0x480] sm:$0xff]
        %v336 = vld [vmem:[%s1 + $0x488] sm:$0xff]
        %v337 = vld [vmem:[%s1 + $0x490] sm:$0xff]
        %v338 = vld [vmem:[%s1 + $0x498] sm:$0xff]
        %v339 = vld [vmem:[%s1 + $0x4a0] sm:$0xff]
        %v340 = vld [vmem:[%s1 + $0x4a8] sm:$0xff]
        %v341 = vld [vmem:[%s1 + $0x4b0] sm:$0xff]
        %v342 = vld [vmem:[%s1 + $0x4b8] sm:$0xff]
        %v343 = vld [vmem:[%s1 + $0x4c0] sm:$0xff]
        %v344 = vld [vmem:[%s1 + $0x4c8] sm:$0xff]
        %v345 = vld [vmem:[%s1 + $0x4d0] sm:$0xff]
        %v346 = vld [vmem:[%s1 + $0x4d8] sm:$0xff]
        %v347 = vld [vmem:[%s1 + $0x4e0] sm:$0xff]
        %v348 = vld [vmem:[%s1 + $0x4e8] sm:$0xff]
        %v349 = vld [vmem:[%s1 + $0x4f0] sm:$0xff]
        %v350 = vld [vmem:[%s1 + $0x4f8] sm:$0xff]
        %v351 = vld [vmem:[%s1 + $0x500] sm:$0xff]
        %v352 = vld [vmem:[%s1 + $0x508] sm:$0xff]
        %v353 = vld [vmem:[%s1 + $0x510] sm:$0xff]
        %v354 = vld [vmem:[%s1 + $0x518] sm:$0xff]
        %v355 = vld [vmem:[%s1 + $0x520] sm:$0xff]
        %v356 = vld [vmem:[%s1 + $0x528] sm:$0xff]
        %v357 = vld [vmem:[%s1 + $0x530] sm:$0xff]
        %v358 = vld [vmem:[%s1 + $0x538] sm:$0xff]
        %v359 = vld [vmem:[%s1 + $0x540] sm:$0xff]
        %v360 = vld [vmem:[%s1 + $0x548] sm:$0xff]
        %v361 = vld [vmem:[%s1 + $0x550] sm:$0xff]
        %v362 = vld [vmem:[%s1 + $0x558] sm:$0xff]
        %v363 = vld [vmem:[%s1 + $0x560] sm:$0xff]
        %v364 = vld [vmem:[%s1 + $0x568] sm:$0xff]
        %v365 = vld [vmem:[%s1 + $0x570] sm:$0xff]
        %v366 = vld [vmem:[%s1 + $0x578] sm:$0xff]
        %v367 = vld [vmem:[%s1 + $0x580] sm:$0xff]
        %v368 = vld [vmem:[%s1 + $0x588] sm:$0xff]
        %v369 = vld [vmem:[%s1 + $0x590] sm:$0xff]
        %v370 = vld [vmem:[%s1 + $0x598] sm:$0xff]
        %v371 = vld [vmem:[%s1 + $0x5a0] sm:$0xff]
        %v372 = vld [vmem:[%s1 + $0x5a8] sm:$0xff]
        %v373 = vld [vmem:[%s1 + $0x5b0] sm:$0xff]
        %v374 = vld [vmem:[%s1 + $0x5b8] sm:$0xff]
        %v375 = vld [vmem:[%s1 + $0x5c0] sm:$0xff]
        %v376 = vld [vmem:[%s1 + $0x5c8] sm:$0xff]
        %v377 = vld [vmem:[%s1 + $0x5d0] sm:$0xff]
        %v378 = vld [vmem:[%s1 + $0x5d8] sm:$0xff]
        %v379 = vld [vmem:[%s1 + $0x5e0] sm:$0xff]
        %v380 = vld [vmem:[%s1 + $0x5e8] sm:$0xff]
        %v381 = vld [vmem:[%s1 + $0x5f0] sm:$0xff]
        %v382 = vld [vmem:[%s1 + $0x5f8] sm:$0xff]
        %v383 = vld [vmem:[%s1 + $0x600] sm:$0xff]
        %v384 = vld [vmem:[%s1 + $0x608] sm:$0xff]
        %v385 = vld [vmem:[%s1 + $0x610] sm:$0xff]
        %v386 = vld [vmem:[%s1 + $0x618] sm:$0xff]
        %v387 = vld [vmem:[%s1 + $0x620] sm:$0xff]
        %v388 = vld [vmem:[%s1 + $0x628] sm:$0xff]
        %v389 = vld [vmem:[%s1 + $0x630] sm:$0xff]
        %v390 = vld [vmem:[%s1 + $0x638] sm:$0xff]
        %v391 = vld [vmem:[%s1 + $0x640] sm:$0xff]
        %v392 = vld [vmem:[%s1 + $0x648] sm:$0xff]
        %v393 = vld [vmem:[%s1 + $0x650] sm:$0xff]
        %v394 = vld [vmem:[%s1 + $0x658] sm:$0xff]
        %v395 = vld [vmem:[%s1 + $0x660] sm:$0xff]
        %v396 = vld [vmem:[%s1 + $0x668] sm:$0xff]
        %v397 = vld [vmem:[%s1 + $0x670] sm:$0xff]
        %v398 = vld [vmem:[%s1 + $0x678] sm:$0xff]
        %v399 = vld [vmem:[%s1 + $0x680] sm:$0xff]
        %v400 = vld [vmem:[%s1 + $0x688] sm:$0xff]
        %v401 = vld [vmem:[%s1 + $0x690] sm:$0xff]
        %v402 = vld [vmem:[%s1 + $0x698] sm:$0xff]
        %v403 = vld [vmem:[%s1 + $0x6a0] sm:$0xff]
        %v404 = vld [vmem:[%s1 + $0x6a8] sm:$0xff]
        %v405 = vld [vmem:[%s1 + $0x6b0] sm:$0xff]
        %v406 = vld [vmem:[%s1 + $0x6b8] sm:$0xff]
        %v407 = vld [vmem:[%s1 + $0x6c0] sm:$0xff]
        %v408 = vld [vmem:[%s1 + $0x6c8] sm:$0xff]
        %v409 = vld [vmem:[%s1 + $0x6d0] sm:$0xff]
        %v410 = vld [vmem:[%s1 + $0x6d8] sm:$0xff]
        %v411 = vld [vmem:[%s1 + $0x6e0] sm:$0xff]
        %v412 = vld [vmem:[%s1 + $0x6e8] sm:$0xff]
        %v413 = vld [vmem:[%s1 + $0x6f0] sm:$0xff]
        %v414 = vld [vmem:[%s1 + $0x6f8] sm:$0xff]
        %v415 = vld [vmem:[%s1 + $0x700] sm:$0xff]
        %v416 = vld [vmem:[%s1 + $0x708] sm:$0xff]
        %v417 = vld [vmem:[%s1 + $0x710] sm:$0xff]
        %v418 = vld [vmem:[%s1 + $0x718] sm:$0xff]
        %v419 = vld [vmem:[%s1 + $0x720] sm:$0xff]
        %v420 = vld [vmem:[%s1 + $0x728] sm:$0xff]
        %v421 = vld [vmem:[%s1 + $0x730] sm:$0xff]
        %v422 = vld [vmem:[%s1 + $0x738] sm:$0xff]
        %v423 = vld [vmem:[%s1 + $0x740] sm:$0xff]
        %v424 = vld [vmem:[%s1 + $0x748] sm:$0xff]
        %v425 = vld [vmem:[%s1 + $0x750] sm:$0xff]
        %v426 = vld [vmem:[%s1 + $0x758] sm:$0xff]
        %v427 = vld [vmem:[%s1 + $0x760] sm:$0xff]
        %v428 = vld [vmem:[%s1 + $0x768] sm:$0xff]
        %v429 = vld [vmem:[%s1 + $0x770] sm:$0xff]
        %v430 = vld [vmem:[%s1 + $0x778] sm:$0xff]
        %v431 = vld [vmem:[%s1 + $0x780] sm:$0xff]
        %v432 = vld [vmem:[%s1 + $0x788] sm:$0xff]
        %v433 = vld [vmem:[%s1 + $0x790] sm:$0xff]
        %v434 = vld [vmem:[%s1 + $0x798] sm:$0xff]
        %v435 = vld [vmem:[%s1 + $0x7a0] sm:$0xff]
        %v436 = vld [vmem:[%s1 + $0x7a8] sm:$0xff]
        %v437 = vld [vmem:[%s1 + $0x7b0] sm:$0xff]
        %v438 = vld [vmem:[%s1 + $0x7b8] sm:$0xff]
        %v439 = vld [vmem:[%s1 + $0x7c0] sm:$0xff]
        %v440 = vld [vmem:[%s1 + $0x7c8] sm:$0xff]
        %v441 = vld [vmem:[%s1 + $0x7d0] sm:$0xff]
        %v442 = vld [vmem:[%s1 + $0x7d8] sm:$0xff]
        %v443 = vld [vmem:[%s1 + $0x7e0] sm:$0xff]
        %v444 = vld [vmem:[%s1 + $0x7e8] sm:$0xff]
        %v445 = vld [vmem:[%s1 + $0x7f0] sm:$0xff]
        %v446 = vld [vmem:[%s1 + $0x7f8] sm:$0xff]
        %v447 = vld [vmem:[%s1 + $0x800] sm:$0xff]
        %v448 = vld [vmem:[%s1 + $0x808] sm:$0xff]
        %v449 = vld [vmem:[%s1 + $0x810] sm:$0xff]
        %v450 = vld [vmem:[%s1 + $0x818] sm:$0xff]
        %v451 = vld [vmem:[%s1 + $0x820] sm:$0xff]
        %v452 = vld [vmem:[%s1 + $0x828] sm:$0xff]
        %v453 = vld [vmem:[%s1 + $0x830] sm:$0xff]
        %v454 = vld [vmem:[%s1 + $0x838] sm:$0xff]
        %v455 = vld [vmem:[%s1 + $0x840] sm:$0xff]
        %v456 = vld [vmem:[%s1 + $0x848] sm:$0xff]
        %v457 = vld [vmem:[%s1 + $0x850] sm:$0xff]
        %v458 = vld [vmem:[%s1 + $0x858] sm:$0xff]
        %v459 = vld [vmem:[%s1 + $0x860] sm:$0xff]
        %v460 = vld [vmem:[%s1 + $0x868] sm:$0xff]
        %v461 = vld [vmem:[%s1 + $0x870] sm:$0xff]
        %v462 = vld [vmem:[%s1 + $0x878] sm:$0xff]
        %v463 = vld [vmem:[%s1 + $0x880] sm:$0xff]
        %v464 = vld [vmem:[%s1 + $0x888] sm:$0xff]
        %v465 = vld [vmem:[%s1 + $0x890] sm:$0xff]
        %v466 = vld [vmem:[%s1 + $0x898] sm:$0xff]
        %v467 = vld [vmem:[%s1 + $0x8a0] sm:$0xff]
        %v468 = vld [vmem:[%s1 + $0x8a8] sm:$0xff]
        %v469 = vld [vmem:[%s1 + $0x8b0] sm:$0xff]
        %v470 = vld [vmem:[%s1 + $0x8b8] sm:$0xff]
        %v471 = vld [vmem:[%s1 + $0x8c0] sm:$0xff]
        %v472 = vld [vmem:[%s1 + $0x8c8] sm:$0xff]
        %v473 = vld [vmem:[%s1 + $0x8d0] sm:$0xff]
        %v474 = vld [vmem:[%s1 + $0x8d8] sm:$0xff]
        %v475 = vld [vmem:[%s1 + $0x8e0] sm:$0xff]
        %v476 = vld [vmem:[%s1 + $0x8e8] sm:$0xff]
        %v477 = vld [vmem:[%s1 + $0x8f0] sm:$0xff]
        %v478 = vld [vmem:[%s1 + $0x8f8] sm:$0xff]
        %v479 = vld [vmem:[%s1 + $0x900] sm:$0xff]
        %v480 = vld [vmem:[%s1 + $0x908] sm:$0xff]
        %v481 = vld [vmem:[%s1 + $0x910] sm:$0xff]
        %v482 = vld [vmem:[%s1 + $0x918] sm:$0xff]
        %v483 = vld [vmem:[%s1 + $0x920] sm:$0xff]
        %v484 = vld [vmem:[%s1 + $0x928] sm:$0xff]
        %v485 = vld [vmem:[%s1 + $0x930] sm:$0xff]
        %v486 = vld [vmem:[%s1 + $0x938] sm:$0xff]
        %v487 = vld [vmem:[%s1 + $0x940] sm:$0xff]
        %v488 = vld [vmem:[%s1 + $0x948] sm:$0xff]
        %v489 = vld [vmem:[%s1 + $0x950] sm:$0xff]
        %v490 = vld [vmem:[%s1 + $0x958] sm:$0xff]
        %v491 = vld [vmem:[%s1 + $0x960] sm:$0xff]
        %v492 = vld [vmem:[%s1 + $0x968] sm:$0xff]
        %v493 = vld [vmem:[%s1 + $0x970] sm:$0xff]
        %v494 = vld [vmem:[%s1 + $0x978] sm:$0xff]
        %v495 = vld [vmem:[%s1 + $0x980] sm:$0xff]
        %v496 = vld [vmem:[%s1 + $0x988] sm:$0xff]
        %v497 = vld [vmem:[%s1 + $0x990] sm:$0xff]
        %v498 = vld [vmem:[%s1 + $0x998] sm:$0xff]
        %v499 = vld [vmem:[%s1 + $0x9a0] sm:$0xff]
        %v500 = vld [vmem:[%s1 + $0x9a8] sm:$0xff]
        %v501 = vld [vmem:[%s1 + $0x9b0] sm:$0xff]
        %v502 = vld [vmem:[%s1 + $0x9b8] sm:$0xff]
        %v503 = vld [vmem:[%s1 + $0x9c0] sm:$0xff]
        %v504 = vld [vmem:[%s1 + $0x9c8] sm:$0xff]
        %v505 = vld [vmem:[%s1 + $0x9d0] sm:$0xff]
        %v506 = vld [vmem:[%s1 + $0x9d8] sm:$0xff]
        %v507 = vld [vmem:[%s1 + $0x9e0] sm:$0xff]
        %v508 = vld [vmem:[%s1 + $0x9e8] sm:$0xff]
        %v509 = vld [vmem:[%s1 + $0x9f0] sm:$0xff]
        %v510 = vld [vmem:[%s1 + $0x9f8] sm:$0xff]
        %v511 = vld [vmem:[%s1 + $0xa00] sm:$0xff]
        %v512 = vld [vmem:[%s1 + $0xa08] sm:$0xff]
        %v513 = vld [vmem:[%s1 + $0xa10] sm:$0xff]
        %v514 = vld [vmem:[%s1 + $0xa18] sm:$0xff]
        %v515 = vld [vmem:[%s1 + $0xa20] sm:$0xff]
        %v516 = vld [vmem:[%s1 + $0xa28] sm:$0xff]
        %v517 = vld [vmem:[%s1 + $0xa30] sm:$0xff]
        %v518 = vld [vmem:[%s1 + $0xa38] sm:$0xff]
        %v519 = vld [vmem:[%s1 + $0xa40] sm:$0xff]
        %v520 = vld [vmem:[%s1 + $0xa48] sm:$0xff]
        %v521 = vld [vmem:[%s1 + $0xa50] sm:$0xff]
        %v522 = vld [vmem:[%s1 + $0xa58] sm:$0xff]
        %v523 = vld [vmem:[%s1 + $0xa60] sm:$0xff]
        %v524 = vld [vmem:[%s1 + $0xa68] sm:$0xff]
        %v525 = vld [vmem:[%s1 + $0xa70] sm:$0xff]
        %v526 = vld [vmem:[%s1 + $0xa78] sm:$0xff]
        %v527 = vld [vmem:[%s1 + $0xa80] sm:$0xff]
        %v528 = vld [vmem:[%s1 + $0xa88] sm:$0xff]
        %v529 = vld [vmem:[%s1 + $0xa90] sm:$0xff]
        %v530 = vld [vmem:[%s1 + $0xa98] sm:$0xff]
        %v531 = vld [vmem:[%s1 + $0xaa0] sm:$0xff]
        %v532 = vld [vmem:[%s1 + $0xaa8] sm:$0xff]
        %v533 = vld [vmem:[%s1 + $0xab0] sm:$0xff]
        %v534 = vld [vmem:[%s1 + $0xab8] sm:$0xff]
        %v535 = vld [vmem:[%s1 + $0xac0] sm:$0xff]
        %v536 = vld [vmem:[%s1 + $0xac8] sm:$0xff]
        %v537 = vld [vmem:[%s1 + $0xad0] sm:$0xff]
        %v538 = vld [vmem:[%s1 + $0xad8] sm:$0xff]
        %v539 = vld [vmem:[%s1 + $0xae0] sm:$0xff]
        %v540 = vld [vmem:[%s1 + $0xae8] sm:$0xff]
        %v541 = vld [vmem:[%s1 + $0xaf0] sm:$0xff]
        %v542 = vld [vmem:[%s1 + $0xaf8] sm:$0xff]
        %v543 = vld [vmem:[%s1 + $0xb00] sm:$0xff]
        %v544 = vld [vmem:[%s1 + $0xb08] sm:$0xff]
        %v545 = vld [vmem:[%s1 + $0xb10] sm:$0xff]
        %v546 = vld [vmem:[%s1 + $0xb18] sm:$0xff]
        %v547 = vld [vmem:[%s1 + $0xb20] sm:$0xff]
        %v548 = vld [vmem:[%s1 + $0xb28] sm:$0xff]
        %v549 = vld [vmem:[%s1 + $0xb30] sm:$0xff]
        %v550 = vld [vmem:[%s1 + $0xb38] sm:$0xff]
        %v551 = vld [vmem:[%s1 + $0xb40] sm:$0xff]
        %v552 = vld [vmem:[%s1 + $0xb48] sm:$0xff]
        %v553 = vld [vmem:[%s1 + $0xb50] sm:$0xff]
        %v554 = vld [vmem:[%s1 + $0xb58] sm:$0xff]
        %v555 = vld [vmem:[%s1 + $0xb60] sm:$0xff]
        %v556 = vld [vmem:[%s1 + $0xb68] sm:$0xff]
        %v557 = vld [vmem:[%s1 + $0xb70] sm:$0xff]
        %v558 = vld [vmem:[%s1 + $0xb78] sm:$0xff]
        %v559 = vld [vmem:[%s1 + $0xb80] sm:$0xff]
        %v560 = vld [vmem:[%s1 + $0xb88] sm:$0xff]
        %v561 = vld [vmem:[%s1 + $0xb90] sm:$0xff]
        %v562 = vld [vmem:[%s1 + $0xb98] sm:$0xff]
        %v563 = vld [vmem:[%s1 + $0xba0] sm:$0xff]
        %v564 = vld [vmem:[%s1 + $0xba8] sm:$0xff]
        %v565 = vld [vmem:[%s1 + $0xbb0] sm:$0xff]
        %v566 = vld [vmem:[%s1 + $0xbb8] sm:$0xff]
        %v567 = vld [vmem:[%s1 + $0xbc0] sm:$0xff]
        %v568 = vld [vmem:[%s1 + $0xbc8] sm:$0xff]
        %v569 = vld [vmem:[%s1 + $0xbd0] sm:$0xff]
        %v570 = vld [vmem:[%s1 + $0xbd8] sm:$0xff]
        %v571 = vld [vmem:[%s1 + $0xbe0] sm:$0xff]
        %v572 = vld [vmem:[%s1 + $0xbe8] sm:$0xff]
        %v573 = vld [vmem:[%s1 + $0xbf0] sm:$0xff]
        %v574 = vld [vmem:[%s1 + $0xbf8] sm:$0xff]
        %v575 = vld [vmem:[%s1 + $0xc00] sm:$0xff]
        %v576 = vld [vmem:[%s1 + $0xc08] sm:$0xff]
        %v577 = vld [vmem:[%s1 + $0xc10] sm:$0xff]
        %v578 = vld [vmem:[%s1 + $0xc18] sm:$0xff]
        %v579 = vld [vmem:[%s1 + $0xc20] sm:$0xff]
        %v580 = vld [vmem:[%s1 + $0xc28] sm:$0xff]
        %v581 = vld [vmem:[%s1 + $0xc30] sm:$0xff]
        %v582 = vld [vmem:[%s1 + $0xc38] sm:$0xff]
        %v583 = vld [vmem:[%s1 + $0xc40] sm:$0xff]
        %v584 = vld [vmem:[%s1 + $0xc48] sm:$0xff]
        %v585 = vld [vmem:[%s1 + $0xc50] sm:$0xff]
        %v586 = vld [vmem:[%s1 + $0xc58] sm:$0xff]
        %v587 = vld [vmem:[%s1 + $0xc60] sm:$0xff]
        %v588 = vld [vmem:[%s1 + $0xc68] sm:$0xff]
        %v589 = vld [vmem:[%s1 + $0xc70] sm:$0xff]
        %v590 = vld [vmem:[%s1 + $0xc78] sm:$0xff]
        %v591 = vld [vmem:[%s1 + $0xc80] sm:$0xff]
        %v592 = vld [vmem:[%s1 + $0xc88] sm:$0xff]
        %v593 = vld [vmem:[%s1 + $0xc90] sm:$0xff]
        %v594 = vld [vmem:[%s1 + $0xc98] sm:$0xff]
        %v595 = vld [vmem:[%s1 + $0xca0] sm:$0xff]
        %v596 = vld [vmem:[%s1 + $0xca8] sm:$0xff]
        %v597 = vld [vmem:[%s1 + $0xcb0] sm:$0xff]
        %v598 = vld [vmem:[%s1 + $0xcb8] sm:$0xff]
        %v599 = vld [vmem:[%s1 + $0xcc0] sm:$0xff]
        %v600 = vld [vmem:[%s1 + $0xcc8] sm:$0xff]
        %v601 = vld [vmem:[%s1 + $0xcd0] sm:$0xff]
        %v602 = vld [vmem:[%s1 + $0xcd8] sm:$0xff]
        %v603 = vld [vmem:[%s1 + $0xce0] sm:$0xff]
        %v604 = vld [vmem:[%s1 + $0xce8] sm:$0xff]
        %v605 = vld [vmem:[%s1 + $0xcf0] sm:$0xff]
        %v606 = vld [vmem:[%s1 + $0xcf8] sm:$0xff]
        %v607 = vld [vmem:[%s1 + $0xd00] sm:$0xff]
        %v608 = vld [vmem:[%s1 + $0xd08] sm:$0xff]
        %v609 = vld [vmem:[%s1 + $0xd10] sm:$0xff]
        %v610 = vld [vmem:[%s1 + $0xd18] sm:$0xff]
        %v611 = vld [vmem:[%s1 + $0xd20] sm:$0xff]
        %v612 = vld [vmem:[%s1 + $0xd28] sm:$0xff]
        %v613 = vld [vmem:[%s1 + $0xd30] sm:$0xff]
        %v614 = vld [vmem:[%s1 + $0xd38] sm:$0xff]
        %v615 = vld [vmem:[%s1 + $0xd40] sm:$0xff]
        %v616 = vld [vmem:[%s1 + $0xd48] sm:$0xff]
        %v617 = vld [vmem:[%s1 + $0xd50] sm:$0xff]
        %v618 = vld [vmem:[%s1 + $0xd58] sm:$0xff]
        %v619 = vld [vmem:[%s1 + $0xd60] sm:$0xff]
        %v620 = vld [vmem:[%s1 + $0xd68] sm:$0xff]
        %v621 = vld [vmem:[%s1 + $0xd70] sm:$0xff]
        %v622 = vld [vmem:[%s1 + $0xd78] sm:$0xff]
        %v623 = vld [vmem:[%s1 + $0xd80] sm:$0xff]
        %v624 = vld [vmem:[%s1 + $0xd88] sm:$0xff]
        %v625 = vld [vmem:[%s1 + $0xd90] sm:$0xff]
        %v626 = vld [vmem:[%s1 + $0xd98] sm:$0xff]
        %v627 = vld [vmem:[%s1 + $0xda0] sm:$0xff]
        %v628 = vld [vmem:[%s1 + $0xda8] sm:$0xff]
        %v629 = vld [vmem:[%s1 + $0xdb0] sm:$0xff]
        %v630 = vld [vmem:[%s1 + $0xdb8] sm:$0xff]
        %v631 = vld [vmem:[%s1 + $0xdc0] sm:$0xff]
        %v632 = vld [vmem:[%s1 + $0xdc8] sm:$0xff]
        %v633 = vld [vmem:[%s1 + $0xdd0] sm:$0xff]
        %v634 = vld [vmem:[%s1 + $0xdd8] sm:$0xff]
        %v635 = vld [vmem:[%s1 + $0xde0] sm:$0xff]
        %v636 = vld [vmem:[%s1 + $0xde8] sm:$0xff]
        %v637 = vld [vmem:[%s1 + $0xdf0] sm:$0xff]
        %v638 = vld [vmem:[%s1 + $0xdf8] sm:$0xff]
        %v639 = vld [vmem:[%s1 + $0xe00] sm:$0xff]
        %v640 = vld [vmem:[%s1 + $0xe08] sm:$0xff]
        %v641 = vld [vmem:[%s1 + $0xe10] sm:$0xff]
        %v642 = vld [vmem:[%s1 + $0xe18] sm:$0xff]
        %v643 = vld [vmem:[%s1 + $0xe20] sm:$0xff]
        %v644 = vld [vmem:[%s1 + $0xe28] sm:$0xff]
        %v645 = vld [vmem:[%s1 + $0xe30] sm:$0xff]
        %v646 = vld [vmem:[%s1 + $0xe38] sm:$0xff]
        %v647 = vld [vmem:[%s1 + $0xe40] sm:$0xff]
        %v648 = vld [vmem:[%s1 + $0xe48] sm:$0xff]
        %v649 = vld [vmem:[%s1 + $0xe50] sm:$0xff]
        %v650 = vld [vmem:[%s1 + $0xe58] sm:$0xff]
        %v651 = vld [vmem:[%s1 + $0xe60] sm:$0xff]
        %v652 = vld [vmem:[%s1 + $0xe68] sm:$0xff]
        %v653 = vld [vmem:[%s1 + $0xe70] sm:$0xff]
        %v654 = vld [vmem:[%s1 + $0xe78] sm:$0xff]
        %v655 = vld [vmem:[%s1 + $0xe80] sm:$0xff]
        %v656 = vld [vmem:[%s1 + $0xe88] sm:$0xff]
        %v657 = vld [vmem:[%s1 + $0xe90] sm:$0xff]
        %v658 = vld [vmem:[%s1 + $0xe98] sm:$0xff]
        %v659 = vld [vmem:[%s1 + $0xea0] sm:$0xff]
        %v660 = vld [vmem:[%s1 + $0xea8] sm:$0xff]
        %v661 = vld [vmem:[%s1 + $0xeb0] sm:$0xff]
        %v662 = vld [vmem:[%s1 + $0xeb8] sm:$0xff]
        %v663 = vld [vmem:[%s1 + $0xec0] sm:$0xff]
        %v664 = vld [vmem:[%s1 + $0xec8] sm:$0xff]
        %v665 = vld [vmem:[%s1 + $0xed0] sm:$0xff]
        %v666 = vld [vmem:[%s1 + $0xed8] sm:$0xff]
        %v667 = vld [vmem:[%s1 + $0xee0] sm:$0xff]
        %v668 = vld [vmem:[%s1 + $0xee8] sm:$0xff]
        %v669 = vld [vmem:[%s1 + $0xef0] sm:$0xff]
        %v670 = vld [vmem:[%s1 + $0xef8] sm:$0xff]
        %v671 = vld [vmem:[%s1 + $0xf00] sm:$0xff]
        %v672 = vld [vmem:[%s1 + $0xf08] sm:$0xff]
        %v673 = vld [vmem:[%s1 + $0xf10] sm:$0xff]
        %v674 = vld [vmem:[%s1 + $0xf18] sm:$0xff]
        %v675 = vld [vmem:[%s1 + $0xf20] sm:$0xff]
        %v676 = vld [vmem:[%s1 + $0xf28] sm:$0xff]
        %v677 = vld [vmem:[%s1 + $0xf30] sm:$0xff]
        %v678 = vld [vmem:[%s1 + $0xf38] sm:$0xff]
        %v679 = vld [vmem:[%s1 + $0xf40] sm:$0xff]
        %v680 = vld [vmem:[%s1 + $0xf48] sm:$0xff]
        %v681 = vld [vmem:[%s1 + $0xf50] sm:$0xff]
        %v682 = vld [vmem:[%s1 + $0xf58] sm:$0xff]
        %v683 = vld [vmem:[%s1 + $0xf60] sm:$0xff]
        %v684 = vld [vmem:[%s1 + $0xf68] sm:$0xff]
        %v685 = vld [vmem:[%s1 + $0xf70] sm:$0xff]
        %v686 = vld [vmem:[%s1 + $0xf78] sm:$0xff]
        %v687 = vld [vmem:[%s1 + $0xf80] sm:$0xff]
        %v688 = vld [vmem:[%s1 + $0xf88] sm:$0xff]
        %v689 = vld [vmem:[%s1 + $0xf90] sm:$0xff]
        %v690 = vld [vmem:[%s1 + $0xf98] sm:$0xff]
        %v691 = vld [vmem:[%s1 + $0xfa0] sm:$0xff]
        %v692 = vld [vmem:[%s1 + $0xfa8] sm:$0xff]
        %v693 = vld [vmem:[%s1 + $0xfb0] sm:$0xff]
        %v694 = vld [vmem:[%s1 + $0xfb8] sm:$0xff]
        %v695 = vld [vmem:[%s1 + $0xfc0] sm:$0xff]
        %v696 = vld [vmem:[%s1 + $0xfc8] sm:$0xff]
        %v697 = vld [vmem:[%s1 + $0xfd0] sm:$0xff]
        %v698 = vld [vmem:[%s1 + $0xfd8] sm:$0xff]
        %v699 = vld [vmem:[%s1 + $0xfe0] sm:$0xff]
        %v700 = vld [vmem:[%s1 + $0xfe8] sm:$0xff]
        %v701 = vld [vmem:[%s1 + $0xff0] sm:$0xff]
        %v702 = vld [vmem:[%s1 + $0xff8] sm:$0xff]
        %v703 = vld [vmem:[%s1 + $0x1000] sm:$0xff]
        %v704 = vld [vmem:[%s1 + $0x1008] sm:$0xff]
        %v705 = vld [vmem:[%s1 + $0x1010] sm:$0xff]
        %v706 = vld [vmem:[%s1 + $0x1018] sm:$0xff]
        %v707 = vld [vmem:[%s1 + $0x1020] sm:$0xff]
        %v708 = vld [vmem:[%s1 + $0x1028] sm:$0xff]
        %v709 = vld [vmem:[%s1 + $0x1030] sm:$0xff]
        %v710 = vld [vmem:[%s1 + $0x1038] sm:$0xff]
        %v711 = vld [vmem:[%s1 + $0x1040] sm:$0xff]
        %v712 = vld [vmem:[%s1 + $0x1048] sm:$0xff]
        %v713 = vld [vmem:[%s1 + $0x1050] sm:$0xff]
        %v714 = vld [vmem:[%s1 + $0x1058] sm:$0xff]
        %v715 = vld [vmem:[%s1 + $0x1060] sm:$0xff]
        %v716 = vld [vmem:[%s1 + $0x1068] sm:$0xff]
        %v717 = vld [vmem:[%s1 + $0x1070] sm:$0xff]
        %v718 = vld [vmem:[%s1 + $0x1078] sm:$0xff]
        %v719 = vld [vmem:[%s1 + $0x1080] sm:$0xff]
        %v720 = vld [vmem:[%s1 + $0x1088] sm:$0xff]
        %v721 = vld [vmem:[%s1 + $0x1090] sm:$0xff]
        %v722 = vld [vmem:[%s1 + $0x1098] sm:$0xff]
        %v723 = vld [vmem:[%s1 + $0x10a0] sm:$0xff]
        %v724 = vld [vmem:[%s1 + $0x10a8] sm:$0xff]
        %v725 = vld [vmem:[%s1 + $0x10b0] sm:$0xff]
        %v726 = vld [vmem:[%s1 + $0x10b8] sm:$0xff]
        %v727 = vld [vmem:[%s1 + $0x10c0] sm:$0xff]
        %v728 = vld [vmem:[%s1 + $0x10c8] sm:$0xff]
        %v729 = vld [vmem:[%s1 + $0x10d0] sm:$0xff]
        %v730 = vld [vmem:[%s1 + $0x10d8] sm:$0xff]
        %v731 = vld [vmem:[%s1 + $0x10e0] sm:$0xff]
        %v732 = vld [vmem:[%s1 + $0x10e8] sm:$0xff]
        %v733 = vld [vmem:[%s1 + $0x10f0] sm:$0xff]
        %v734 = vld [vmem:[%s1 + $0x10f8] sm:$0xff]
        %v735 = vld [vmem:[%s1 + $0x1100] sm:$0xff]
        %v736 = vld [vmem:[%s1 + $0x1108] sm:$0xff]
        %v737 = vld [vmem:[%s1 + $0x1110] sm:$0xff]
        %v738 = vld [vmem:[%s1 + $0x1118] sm:$0xff]
        %v739 = vld [vmem:[%s1 + $0x1120] sm:$0xff]
        %v740 = vld [vmem:[%s1 + $0x1128] sm:$0xff]
        %v741 = vld [vmem:[%s1 + $0x1130] sm:$0xff]
        %v742 = vld [vmem:[%s1 + $0x1138] sm:$0xff]
        %v743 = vld [vmem:[%s1 + $0x1140] sm:$0xff]
        %v744 = vld [vmem:[%s1 + $0x1148] sm:$0xff]
        %v745 = vld [vmem:[%s1 + $0x1150] sm:$0xff]
        %v746 = vld [vmem:[%s1 + $0x1158] sm:$0xff]
        %v747 = vld [vmem:[%s1 + $0x1160] sm:$0xff]
        %v748 = vld [vmem:[%s1 + $0x1168] sm:$0xff]
        %v749 = vld [vmem:[%s1 + $0x1170] sm:$0xff]
        %v750 = vld [vmem:[%s1 + $0x1178] sm:$0xff]
        %v751 = vld [vmem:[%s1 + $0x1180] sm:$0xff]
        %v752 = vld [vmem:[%s1 + $0x1188] sm:$0xff]
        %v753 = vld [vmem:[%s1 + $0x1190] sm:$0xff]
        %v754 = vld [vmem:[%s1 + $0x1198] sm:$0xff]
        %v755 = vld [vmem:[%s1 + $0x11a0] sm:$0xff]
        %v756 = vld [vmem:[%s1 + $0x11a8] sm:$0xff]
        %v757 = vld [vmem:[%s1 + $0x11b0] sm:$0xff]
        %v758 = vld [vmem:[%s1 + $0x11b8] sm:$0xff]
        %v759 = vld [vmem:[%s1 + $0x11c0] sm:$0xff]
        %v760 = vld [vmem:[%s1 + $0x11c8] sm:$0xff]
        %v761 = vld [vmem:[%s1 + $0x11d0] sm:$0xff]
        %v762 = vld [vmem:[%s1 + $0x11d8] sm:$0xff]
        %v763 = vld [vmem:[%s1 + $0x11e0] sm:$0xff]
        %v764 = vld [vmem:[%s1 + $0x11e8] sm:$0xff]
        %v765 = vld [vmem:[%s1 + $0x11f0] sm:$0xff]
        %v766 = vld [vmem:[%s1 + $0x11f8] sm:$0xff]
        %v767 = vld [vmem:[%s1 + $0x1200] sm:$0xff]
        %v768 = vld [vmem:[%s1 + $0x1208] sm:$0xff]
        %v769 = vld [vmem:[%s1 + $0x1210] sm:$0xff]
        %v770 = vld [vmem:[%s1 + $0x1218] sm:$0xff]
        %v771 = vld [vmem:[%s1 + $0x1220] sm:$0xff]
        %v772 = vld [vmem:[%s1 + $0x1228] sm:$0xff]
        %v773 = vld [vmem:[%s1 + $0x1230] sm:$0xff]
        %v774 = vld [vmem:[%s1 + $0x1238] sm:$0xff]
        %v775 = vld [vmem:[%s1 + $0x1240] sm:$0xff]
        %v776 = vld [vmem:[%s1 + $0x1248] sm:$0xff]
        %v777 = vld [vmem:[%s1 + $0x1250] sm:$0xff]
        %v778 = vld [vmem:[%s1 + $0x1258] sm:$0xff]
        %v779 = vld [vmem:[%s1 + $0x1260] sm:$0xff]
        %v780 = vld [vmem:[%s1 + $0x1268] sm:$0xff]
        %v781 = vld [vmem:[%s1 + $0x1270] sm:$0xff]
        %v782 = vld [vmem:[%s1 + $0x1278] sm:$0xff]
        %v783 = vld [vmem:[%s1 + $0x1280] sm:$0xff]
        %v784 = vld [vmem:[%s1 + $0x1288] sm:$0xff]
        %v785 = vld [vmem:[%s1 + $0x1290] sm:$0xff]
        %v786 = vld [vmem:[%s1 + $0x1298] sm:$0xff]
        %v787 = vld [vmem:[%s1 + $0x12a0] sm:$0xff]
        %v788 = vld [vmem:[%s1 + $0x12a8] sm:$0xff]
        %v789 = vld [vmem:[%s1 + $0x12b0] sm:$0xff]
        %v790 = vld [vmem:[%s1 + $0x12b8] sm:$0xff]
        %v791 = vld [vmem:[%s1 + $0x12c0] sm:$0xff]
        %v792 = vld [vmem:[%s1 + $0x12c8] sm:$0xff]
        %v793 = vld [vmem:[%s1 + $0x12d0] sm:$0xff]
        %v794 = vld [vmem:[%s1 + $0x12d8] sm:$0xff]
        %v795 = vld [vmem:[%s1 + $0x12e0] sm:$0xff]
        %v796 = vld [vmem:[%s1 + $0x12e8] sm:$0xff]
        %v797 = vld [vmem:[%s1 + $0x12f0] sm:$0xff]
        %v798 = vld [vmem:[%s1 + $0x12f8] sm:$0xff]
        %v799 = vld [vmem:[%s1 + $0x1300] sm:$0xff]
        %v800 = vld [vmem:[%s1 + $0x1308] sm:$0xff]
        %v801 = vld [vmem:[%s1 + $0x1310] sm:$0xff]
        %v802 = vld [vmem:[%s1 + $0x1318] sm:$0xff]
        %v803 = vld [vmem:[%s1 + $0x1320] sm:$0xff]
        %v804 = vld [vmem:[%s1 + $0x1328] sm:$0xff]
        %v805 = vld [vmem:[%s1 + $0x1330] sm:$0xff]
        %v806 = vld [vmem:[%s1 + $0x1338] sm:$0xff]
        %v807 = vld [vmem:[%s1 + $0x1340] sm:$0xff]
        %v808 = vld [vmem:[%s1 + $0x1348] sm:$0xff]
        %v809 = vld [vmem:[%s1 + $0x1350] sm:$0xff]
        %v810 = vld [vmem:[%s1 + $0x1358] sm:$0xff]
        %v811 = vld [vmem:[%s1 + $0x1360] sm:$0xff]
        %v812 = vld [vmem:[%s1 + $0x1368] sm:$0xff]
        %v813 = vld [vmem:[%s1 + $0x1370] sm:$0xff]
        %v814 = vld [vmem:[%s1 + $0x1378] sm:$0xff]
        %v815 = vld [vmem:[%s1 + $0x1380] sm:$0xff]
        %v816 = vld [vmem:[%s1 + $0x1388] sm:$0xff]
        %v817 = vld [vmem:[%s1 + $0x1390] sm:$0xff]
        %v818 = vld [vmem:[%s1 + $0x1398] sm:$0xff]
        %v819 = vld [vmem:[%s1 + $0x13a0] sm:$0xff]
        %v820 = vld [vmem:[%s1 + $0x13a8] sm:$0xff]
        %v821 = vld [vmem:[%s1 + $0x13b0] sm:$0xff]
        %v822 = vld [vmem:[%s1 + $0x13b8] sm:$0xff]
        %v823 = vld [vmem:[%s1 + $0x13c0] sm:$0xff]
        %v824 = vld [vmem:[%s1 + $0x13c8] sm:$0xff]
        %v825 = vld [vmem:[%s1 + $0x13d0] sm:$0xff]
        %v826 = vld [vmem:[%s1 + $0x13d8] sm:$0xff]
        %v827 = vld [vmem:[%s1 + $0x13e0] sm:$0xff]
        %v828 = vld [vmem:[%s1 + $0x13e8] sm:$0xff]
        %v829 = vld [vmem:[%s1 + $0x13f0] sm:$0xff]
        %v830 = vld [vmem:[%s1 + $0x13f8] sm:$0xff]
        %v831 = vld [vmem:[%s1 + $0x1400] sm:$0xff]
        %v832 = vld [vmem:[%s1 + $0x1408] sm:$0xff]
        %v833 = vld [vmem:[%s1 + $0x1410] sm:$0xff]
        %v834 = vld [vmem:[%s1 + $0x1418] sm:$0xff]
        %v835 = vld [vmem:[%s1 + $0x1420] sm:$0xff]
        %v836 = vld [vmem:[%s1 + $0x1428] sm:$0xff]
        %v837 = vld [vmem:[%s1 + $0x1430] sm:$0xff]
        %v838 = vld [vmem:[%s1 + $0x1438] sm:$0xff]
        %v839 = vld [vmem:[%s1 + $0x1440] sm:$0xff]
        %v840 = vld [vmem:[%s1 + $0x1448] sm:$0xff]
        %v841 = vld [vmem:[%s1 + $0x1450] sm:$0xff]
        %v842 = vld [vmem:[%s1 + $0x1458] sm:$0xff]
        %v843 = vld [vmem:[%s1 + $0x1460] sm:$0xff]
        %v844 = vld [vmem:[%s1 + $0x1468] sm:$0xff]
        %v845 = vld [vmem:[%s1 + $0x1470] sm:$0xff]
        %v846 = vld [vmem:[%s1 + $0x1478] sm:$0xff]
        %v847 = vld [vmem:[%s1 + $0x1480] sm:$0xff]
        %v848 = vld [vmem:[%s1 + $0x1488] sm:$0xff]
        %v849 = vld [vmem:[%s1 + $0x1490] sm:$0xff]
        %v850 = vld [vmem:[%s1 + $0x1498] sm:$0xff]
        %v851 = vld [vmem:[%s1 + $0x14a0] sm:$0xff]
        %v852 = vld [vmem:[%s1 + $0x14a8] sm:$0xff]
        %v853 = vld [vmem:[%s1 + $0x14b0] sm:$0xff]
        %v854 = vld [vmem:[%s1 + $0x14b8] sm:$0xff]
        %v855 = vld [vmem:[%s1 + $0x14c0] sm:$0xff]
        %v856 = vld [vmem:[%s1 + $0x14c8] sm:$0xff]
        %v857 = vld [vmem:[%s1 + $0x14d0] sm:$0xff]
        %v858 = vld [vmem:[%s1 + $0x14d8] sm:$0xff]
        %v859 = vld [vmem:[%s1 + $0x14e0] sm:$0xff]
        %v860 = vld [vmem:[%s1 + $0x14e8] sm:$0xff]
        %v861 = vld [vmem:[%s1 + $0x14f0] sm:$0xff]
        %v862 = vld [vmem:[%s1 + $0x14f8] sm:$0xff]
        %v863 = vld [vmem:[%s1 + $0x1500] sm:$0xff]
        %v864 = vld [vmem:[%s1 + $0x1508] sm:$0xff]
        %v865 = vld [vmem:[%s1 + $0x1510] sm:$0xff]
        %v866 = vld [vmem:[%s1 + $0x1518] sm:$0xff]
        %v867 = vld [vmem:[%s1 + $0x1520] sm:$0xff]
        %v868 = vld [vmem:[%s1 + $0x1528] sm:$0xff]
        %v869 = vld [vmem:[%s1 + $0x1530] sm:$0xff]
        %v870 = vld [vmem:[%s1 + $0x1538] sm:$0xff]
        %v871 = vld [vmem:[%s1 + $0x1540] sm:$0xff]
        %v872 = vld [vmem:[%s1 + $0x1548] sm:$0xff]
        %v873 = vld [vmem:[%s1 + $0x1550] sm:$0xff]
        %v874 = vld [vmem:[%s1 + $0x1558] sm:$0xff]
        %v875 = vld [vmem:[%s1 + $0x1560] sm:$0xff]
        %v876 = vld [vmem:[%s1 + $0x1568] sm:$0xff]
        %v877 = vld [vmem:[%s1 + $0x1570] sm:$0xff]
        %v878 = vld [vmem:[%s1 + $0x1578] sm:$0xff]
        %v879 = vld [vmem:[%s1 + $0x1580] sm:$0xff]
        %v880 = vld [vmem:[%s1 + $0x1588] sm:$0xff]
        %v881 = vld [vmem:[%s1 + $0x1590] sm:$0xff]
        %v882 = vld [vmem:[%s1 + $0x1598] sm:$0xff]
        %v883 = vld [vmem:[%s1 + $0x15a0] sm:$0xff]
        %v884 = vld [vmem:[%s1 + $0x15a8] sm:$0xff]
        %v885 = vld [vmem:[%s1 + $0x15b0] sm:$0xff]
        %v886 = vld [vmem:[%s1 + $0x15b8] sm:$0xff]
        %v887 = vld [vmem:[%s1 + $0x15c0] sm:$0xff]
        %v888 = vld [vmem:[%s1 + $0x15c8] sm:$0xff]
        %v889 = vld [vmem:[%s1 + $0x15d0] sm:$0xff]
        %v890 = vld [vmem:[%s1 + $0x15d8] sm:$0xff]
        %v891 = vld [vmem:[%s1 + $0x15e0] sm:$0xff]
        %v892 = vld [vmem:[%s1 + $0x15e8] sm:$0xff]
        %v893 = vld [vmem:[%s1 + $0x15f0] sm:$0xff]
        %v894 = vld [vmem:[%s1 + $0x15f8] sm:$0xff]
        %v895 = vld [vmem:[%s1 + $0x1600] sm:$0xff]
        %v896 = vld [vmem:[%s1 + $0x1608] sm:$0xff]
        %v897 = vld [vmem:[%s1 + $0x1610] sm:$0xff]
        %v898 = vld [vmem:[%s1 + $0x1618] sm:$0xff]
        %v899 = vld [vmem:[%s1 + $0x1620] sm:$0xff]
        %v900 = vld [vmem:[%s1 + $0x1628] sm:$0xff]
        %v901 = vld [vmem:[%s1 + $0x1630] sm:$0xff]
        %v902 = vld [vmem:[%s1 + $0x1638] sm:$0xff]
        %v903 = vld [vmem:[%s1 + $0x1640] sm:$0xff]
        %v904 = vld [vmem:[%s1 + $0x1648] sm:$0xff]
        %v905 = vld [vmem:[%s1 + $0x1650] sm:$0xff]
        %v906 = vld [vmem:[%s1 + $0x1658] sm:$0xff]
        %v907 = vld [vmem:[%s1 + $0x1660] sm:$0xff]
        %v908 = vld [vmem:[%s1 + $0x1668] sm:$0xff]
        %v909 = vld [vmem:[%s1 + $0x1670] sm:$0xff]
        %v910 = vld [vmem:[%s1 + $0x1678] sm:$0xff]
        %v911 = vld [vmem:[%s1 + $0x1680] sm:$0xff]
        %v912 = vld [vmem:[%s1 + $0x1688] sm:$0xff]
        %v913 = vld [vmem:[%s1 + $0x1690] sm:$0xff]
        %v914 = vld [vmem:[%s1 + $0x1698] sm:$0xff]
        %v915 = vld [vmem:[%s1 + $0x16a0] sm:$0xff]
        %v916 = vld [vmem:[%s1 + $0x16a8] sm:$0xff]
        %v917 = vld [vmem:[%s1 + $0x16b0] sm:$0xff]
        %v918 = vld [vmem:[%s1 + $0x16b8] sm:$0xff]
        %v919 = vld [vmem:[%s1 + $0x16c0] sm:$0xff]
        %v920 = vld [vmem:[%s1 + $0x16c8] sm:$0xff]
        %v921 = vld [vmem:[%s1 + $0x16d0] sm:$0xff]
        %v922 = vld [vmem:[%s1 + $0x16d8] sm:$0xff]
        %v923 = vld [vmem:[%s1 + $0x16e0] sm:$0xff]
        %v924 = vld [vmem:[%s1 + $0x16e8] sm:$0xff]
        %v925 = vld [vmem:[%s1 + $0x16f0] sm:$0xff]
        %v926 = vld [vmem:[%s1 + $0x16f8] sm:$0xff]
        %v927 = vld [vmem:[%s1 + $0x1700] sm:$0xff]
        %v928 = vld [vmem:[%s1 + $0x1708] sm:$0xff]
        %v929 = vld [vmem:[%s1 + $0x1710] sm:$0xff]
        %v930 = vld [vmem:[%s1 + $0x1718] sm:$0xff]
        %v931 = vld [vmem:[%s1 + $0x1720] sm:$0xff]
        %v932 = vld [vmem:[%s1 + $0x1728] sm:$0xff]
        %v933 = vld [vmem:[%s1 + $0x1730] sm:$0xff]
        %v934 = vld [vmem:[%s1 + $0x1738] sm:$0xff]
        %v935 = vld [vmem:[%s1 + $0x1740] sm:$0xff]
        %v936 = vld [vmem:[%s1 + $0x1748] sm:$0xff]
        %v937 = vld [vmem:[%s1 + $0x1750] sm:$0xff]
        %v938 = vld [vmem:[%s1 + $0x1758] sm:$0xff]
        %v939 = vld [vmem:[%s1 + $0x1760] sm:$0xff]
        %v940 = vld [vmem:[%s1 + $0x1768] sm:$0xff]
        %v941 = vld [vmem:[%s1 + $0x1770] sm:$0xff]
        %v942 = vld [vmem:[%s1 + $0x1778] sm:$0xff]
        %v943 = vld [vmem:[%s1 + $0x1780] sm:$0xff]
        %v944 = vld [vmem:[%s1 + $0x1788] sm:$0xff]
        %v945 = vld [vmem:[%s1 + $0x1790] sm:$0xff]
        %v946 = vld [vmem:[%s1 + $0x1798] sm:$0xff]
        %v947 = vld [vmem:[%s1 + $0x17a0] sm:$0xff]
        %v948 = vld [vmem:[%s1 + $0x17a8] sm:$0xff]
        %v949 = vld [vmem:[%s1 + $0x17b0] sm:$0xff]
        %v950 = vld [vmem:[%s1 + $0x17b8] sm:$0xff]
        %v951 = vld [vmem:[%s1 + $0x17c0] sm:$0xff]
        %v952 = vld [vmem:[%s1 + $0x17c8] sm:$0xff]
        %v953 = vld [vmem:[%s1 + $0x17d0] sm:$0xff]
        %v954 = vld [vmem:[%s1 + $0x17d8] sm:$0xff]
        %v955 = vld [vmem:[%s1 + $0x17e0] sm:$0xff]
        %v956 = vld [vmem:[%s1 + $0x17e8] sm:$0xff]
        %v957 = vld [vmem:[%s1 + $0x17f0] sm:$0xff]
        %v958 = vld [vmem:[%s1 + $0x17f8] sm:$0xff]
        %v959 = vld [vmem:[%s2] sm:$0x3f]
        %v961 = vlaneseq
        %v962 = vshrl.u32 %v961, 7
        %v963 = vsub.s32 0, %v962
        %v964 = vrot.slane %v959, %v963
        %v965 = vlaneseq
        %v966 = vshrl.u32 %v965, 7
        %v967 = vsub.s32 1, %v966
        %v968 = vrot.slane %v959, %v967
        %v969 = vlaneseq
        %v970 = vshrl.u32 %v969, 7
        %v971 = vsub.s32 2, %v970
        %v972 = vrot.slane %v959, %v971
        %v973 = vlaneseq
        %v974 = vshrl.u32 %v973, 7
        %v975 = vsub.s32 3, %v974
        %v976 = vrot.slane %v959, %v975
        %v977 = vlaneseq
        %v978 = vshrl.u32 %v977, 7
        %v979 = vsub.s32 4, %v978
        %v980 = vrot.slane %v959, %v979
        %v981 = vlaneseq
        %v982 = vshrl.u32 %v981, 7
        %v983 = vsub.s32 5, %v982
        %v984 = vrot.slane %v959, %v983
        %991 = vmatprep.subr.mxu0 %v192
        %992 = vmatpush1.msra.mxu0 %v191
        %993 = vmatprep.subr.mxu0 %v198
        %994 = vmatpush1.msra.mxu0 %v197
        %995 = vmatprep.subr.mxu0 %v204
        %996 = vmatpush1.msra.mxu0 %v203
        %997 = vmatprep.subr.mxu0 %v210
        %998 = vmatpush1.msra.mxu0 %v209
        %999 = vmatprep.subr.mxu0 %v216
        %1000 = vmatpush1.msra.mxu0 %v215
        %1001 = vmatprep.subr.mxu0 %v222
        %1002 = vmatpush1.msra.mxu0 %v221
        %1003 = vmatprep.subr.mxu0 %v228
        %1004 = vmatpush1.msra.mxu0 %v227
        %1005 = vmatprep.subr.mxu0 %v234
        %1006 = vmatpush1.msra.mxu0 %v233
        %1007 = vmatprep.subr.mxu0 %v240
        %1008 = vmatpush1.msra.mxu0 %v239
        %1009 = vmatprep.subr.mxu0 %v246
        %1010 = vmatpush1.msra.mxu0 %v245
        %1011 = vmatprep.subr.mxu0 %v252
        %1012 = vmatpush1.msra.mxu0 %v251
        %1013 = vmatprep.subr.mxu0 %v258
        %1014 = vmatpush1.msra.mxu0 %v257
        %1015 = vmatprep.subr.mxu0 %v264
        %1016 = vmatpush1.msra.mxu0 %v263
        %1017 = vmatprep.subr.mxu0 %v270
        %1018 = vmatpush1.msra.mxu0 %v269
        %1019 = vmatprep.subr.mxu0 %v276
        %1020 = vmatpush1.msra.mxu0 %v275
        %1021 = vmatprep.subr.mxu0 %v282
        %1022 = vmatpush1.msra.mxu0 %v281
        %1023 = vmatprep.subr.mxu0 %v288
        %1024 = vmatpush1.msra.mxu0 %v287
        %1025 = vmatprep.subr.mxu0 %v294
        %1026 = vmatpush1.msra.mxu0 %v293
        %1027 = vmatprep.subr.mxu0 %v300
        %1028 = vmatpush1.msra.mxu0 %v299
        %1029 = vmatprep.subr.mxu0 %v306
        %1030 = vmatpush1.msra.mxu0 %v305
        %1031 = vmatprep.subr.mxu0 %v312
        %1032 = vmatpush1.msra.mxu0 %v311
        %1033 = vmatprep.subr.mxu0 %v318
        %1034 = vmatpush1.msra.mxu0 %v317
        %1035 = vmatprep.subr.mxu0 %v324
        %1036 = vmatpush1.msra.mxu0 %v323
        %1037 = vmatprep.subr.mxu0 %v330
        %1038 = vmatpush1.msra.mxu0 %v329
        %1039 = vmatprep.subr.mxu0 %v336
        %1040 = vmatpush1.msra.mxu0 %v335
        %1041 = vmatprep.subr.mxu0 %v342
        %1042 = vmatpush1.msra.mxu0 %v341
        %1043 = vmatprep.subr.mxu0 %v348
        %1044 = vmatpush1.msra.mxu0 %v347
        %1045 = vmatprep.subr.mxu0 %v354
        %1046 = vmatpush1.msra.mxu0 %v353
        %1047 = vmatprep.subr.mxu0 %v360
        %1048 = vmatpush1.msra.mxu0 %v359
        %1049 = vmatprep.subr.mxu0 %v366
        %1050 = vmatpush1.msra.mxu0 %v365
        %1051 = vmatprep.subr.mxu0 %v372
        %1052 = vmatpush1.msra.mxu0 %v371
        %1053 = vmatprep.subr.mxu0 %v378
        %1054 = vmatpush1.msra.mxu0 %v377
        %1055 = vmatprep.mubr.f32.mxu0 %v176
        %1056 = vmatmul.mubr.f32.gmra.mrb[0].mxu0 %v175
        %v1057 = vpop.f32.mrb[0].mxu0
        %v1058 = vadd.f32 %v964, %v1057
        %v1059 = vpop.f32.mrb[0].mxu0
        %v1060 = vadd.f32 %v968, %v1059
        %1061 = vmatprep.mubr.f32.mxu0 %v184
        %1062 = vmatmul.mubr.f32.gmra.mrb[0].mxu0 %v183
        %v1063 = vpop.f32.mrb[0].mxu0
        %v1064 = vadd.f32 %v964, %v1063
        %v1065 = vpop.f32.mrb[0].mxu0
        %v1066 = vadd.f32 %v968, %v1065
        %1067 = vdwg.mxu0
        %1068 = vmatprep.subr.mxu0 %v384
        %1069 = vmatpush1.msra.mxu0 %v383
        %1070 = vmatprep.subr.mxu0 %v390
        %1071 = vmatpush1.msra.mxu0 %v389
        %1072 = vmatprep.subr.mxu0 %v396
        %1073 = vmatpush1.msra.mxu0 %v395
        %1074 = vmatprep.subr.mxu0 %v402
        %1075 = vmatpush1.msra.mxu0 %v401
        %1076 = vmatprep.subr.mxu0 %v408
        %1077 = vmatpush1.msra.mxu0 %v407
        %1078 = vmatprep.subr.mxu0 %v414
        %1079 = vmatpush1.msra.mxu0 %v413
        %1080 = vmatprep.subr.mxu0 %v420
        %1081 = vmatpush1.msra.mxu0 %v419
        %1082 = vmatprep.subr.mxu0 %v426
        %1083 = vmatpush1.msra.mxu0 %v425
        %1084 = vmatprep.subr.mxu0 %v432
        %1085 = vmatpush1.msra.mxu0 %v431
        %1086 = vmatprep.subr.mxu0 %v438
        %1087 = vmatpush1.msra.mxu0 %v437
        %1088 = vmatprep.subr.mxu0 %v444
        %1089 = vmatpush1.msra.mxu0 %v443
        %1090 = vmatprep.subr.mxu0 %v450
        %1091 = vmatpush1.msra.mxu0 %v449
        %1092 = vmatprep.subr.mxu0 %v456
        %1093 = vmatpush1.msra.mxu0 %v455
        %1094 = vmatprep.subr.mxu0 %v462
        %1095 = vmatpush1.msra.mxu0 %v461
        %1096 = vmatprep.subr.mxu0 %v468
        %1097 = vmatpush1.msra.mxu0 %v467
        %1098 = vmatprep.subr.mxu0 %v474
        %1099 = vmatpush1.msra.mxu0 %v473
        %1100 = vmatprep.subr.mxu0 %v480
        %1101 = vmatpush1.msra.mxu0 %v479
        %1102 = vmatprep.subr.mxu0 %v486
        %1103 = vmatpush1.msra.mxu0 %v485
        %1104 = vmatprep.subr.mxu0 %v492
        %1105 = vmatpush1.msra.mxu0 %v491
        %1106 = vmatprep.subr.mxu0 %v498
        %1107 = vmatpush1.msra.mxu0 %v497
        %1108 = vmatprep.subr.mxu0 %v504
        %1109 = vmatpush1.msra.mxu0 %v503
        %1110 = vmatprep.subr.mxu0 %v510
        %1111 = vmatpush1.msra.mxu0 %v509
        %1112 = vmatprep.subr.mxu0 %v516
        %1113 = vmatpush1.msra.mxu0 %v515
        %1114 = vmatprep.subr.mxu0 %v522
        %1115 = vmatpush1.msra.mxu0 %v521
        %1116 = vmatprep.subr.mxu0 %v528
        %1117 = vmatpush1.msra.mxu0 %v527
        %1118 = vmatprep.subr.mxu0 %v534
        %1119 = vmatpush1.msra.mxu0 %v533
        %1120 = vmatprep.subr.mxu0 %v540
        %1121 = vmatpush1.msra.mxu0 %v539
        %1122 = vmatprep.subr.mxu0 %v546
        %1123 = vmatpush1.msra.mxu0 %v545
        %1124 = vmatprep.subr.mxu0 %v552
        %1125 = vmatpush1.msra.mxu0 %v551
        %1126 = vmatprep.subr.mxu0 %v558
        %1127 = vmatpush1.msra.mxu0 %v557
        %1128 = vmatprep.subr.mxu0 %v564
        %1129 = vmatpush1.msra.mxu0 %v563
        %1130 = vmatprep.subr.mxu0 %v570
        %1131 = vmatpush1.msra.mxu0 %v569
        %1132 = vmatprep.mubr.f32.mxu0 %v178
        %1133 = vmatmul.mubr.f32.gmra.mrb[0].mxu0 %v177
        %v1134 = vpop.f32.mrb[0].mxu0
        %v1135 = vadd.f32 %v1058, %v1134
        %v1136 = vpop.f32.mrb[0].mxu0
        %v1137 = vadd.f32 %v1060, %v1136
        %1138 = vmatprep.mubr.f32.mxu0 %v186
        %1139 = vmatmul.mubr.f32.gmra.mrb[0].mxu0 %v185
        %v1140 = vpop.f32.mrb[0].mxu0
        %v1141 = vadd.f32 %v1064, %v1140
        %v1142 = vpop.f32.mrb[0].mxu0
        %v1143 = vadd.f32 %v1066, %v1142
        %1144 = vdwg.mxu0
        %1145 = vmatprep.subr.mxu0 %v576
        %1146 = vmatpush1.msra.mxu0 %v575
        %1147 = vmatprep.subr.mxu0 %v582
        %1148 = vmatpush1.msra.mxu0 %v581
        %1149 = vmatprep.subr.mxu0 %v588
        %1150 = vmatpush1.msra.mxu0 %v587
        %1151 = vmatprep.subr.mxu0 %v594
        %1152 = vmatpush1.msra.mxu0 %v593
        %1153 = vmatprep.subr.mxu0 %v600
        %1154 = vmatpush1.msra.mxu0 %v599
        %1155 = vmatprep.subr.mxu0 %v606
        %1156 = vmatpush1.msra.mxu0 %v605
        %1157 = vmatprep.subr.mxu0 %v612
        %1158 = vmatpush1.msra.mxu0 %v611
        %1159 = vmatprep.subr.mxu0 %v618
        %1160 = vmatpush1.msra.mxu0 %v617
        %1161 = vmatprep.subr.mxu0 %v624
        %1162 = vmatpush1.msra.mxu0 %v623
        %1163 = vmatprep.subr.mxu0 %v630
        %1164 = vmatpush1.msra.mxu0 %v629
        %1165 = vmatprep.subr.mxu0 %v636
        %1166 = vmatpush1.msra.mxu0 %v635
        %1167 = vmatprep.subr.mxu0 %v642
        %1168 = vmatpush1.msra.mxu0 %v641
        %1169 = vmatprep.subr.mxu0 %v648
        %1170 = vmatpush1.msra.mxu0 %v647
        %1171 = vmatprep.subr.mxu0 %v654
        %1172 = vmatpush1.msra.mxu0 %v653
        %1173 = vmatprep.subr.mxu0 %v660
        %1174 = vmatpush1.msra.mxu0 %v659
        %1175 = vmatprep.subr.mxu0 %v666
        %1176 = vmatpush1.msra.mxu0 %v665
        %1177 = vmatprep.subr.mxu0 %v672
        %1178 = vmatpush1.msra.mxu0 %v671
        %1179 = vmatprep.subr.mxu0 %v678
        %1180 = vmatpush1.msra.mxu0 %v677
        %1181 = vmatprep.subr.mxu0 %v684
        %1182 = vmatpush1.msra.mxu0 %v683
        %1183 = vmatprep.subr.mxu0 %v690
        %1184 = vmatpush1.msra.mxu0 %v689
        %1185 = vmatprep.subr.mxu0 %v696
        %1186 = vmatpush1.msra.mxu0 %v695
        %1187 = vmatprep.subr.mxu0 %v702
        %1188 = vmatpush1.msra.mxu0 %v701
        %1189 = vmatprep.subr.mxu0 %v708
        %1190 = vmatpush1.msra.mxu0 %v707
        %1191 = vmatprep.subr.mxu0 %v714
        %1192 = vmatpush1.msra.mxu0 %v713
        %1193 = vmatprep.subr.mxu0 %v720
        %1194 = vmatpush1.msra.mxu0 %v719
        %1195 = vmatprep.subr.mxu0 %v726
        %1196 = vmatpush1.msra.mxu0 %v725
        %1197 = vmatprep.subr.mxu0 %v732
        %1198 = vmatpush1.msra.mxu0 %v731
        %1199 = vmatprep.subr.mxu0 %v738
        %1200 = vmatpush1.msra.mxu0 %v737
        %1201 = vmatprep.subr.mxu0 %v744
        %1202 = vmatpush1.msra.mxu0 %v743
        %1203 = vmatprep.subr.mxu0 %v750
        %1204 = vmatpush1.msra.mxu0 %v749
        %1205 = vmatprep.subr.mxu0 %v756
        %1206 = vmatpush1.msra.mxu0 %v755
        %1207 = vmatprep.subr.mxu0 %v762
        %1208 = vmatpush1.msra.mxu0 %v761
        %1209 = vmatprep.mubr.f32.mxu0 %v180
        %1210 = vmatmul.mubr.f32.gmra.mrb[0].mxu0 %v179
        %v1211 = vpop.f32.mrb[0].mxu0
        %v1212 = vadd.f32 %v1135, %v1211
        %v1213 = vpop.f32.mrb[0].mxu0
        %v1214 = vadd.f32 %v1137, %v1213
        %1215 = vmatprep.mubr.f32.mxu0 %v188
        %1216 = vmatmul.mubr.f32.gmra.mrb[0].mxu0 %v187
        %v1217 = vpop.f32.mrb[0].mxu0
        %v1218 = vadd.f32 %v1141, %v1217
        %v1219 = vpop.f32.mrb[0].mxu0
        %v1220 = vadd.f32 %v1143, %v1219
        %1221 = vdwg.mxu0
        %1222 = vmatprep.subr.mxu0 %v768
        %1223 = vmatpush1.msra.mxu0 %v767
        %1224 = vmatprep.subr.mxu0 %v774
        %1225 = vmatpush1.msra.mxu0 %v773
        %1226 = vmatprep.subr.mxu0 %v780
        %1227 = vmatpush1.msra.mxu0 %v779
        %1228 = vmatprep.subr.mxu0 %v786
        %1229 = vmatpush1.msra.mxu0 %v785
        %1230 = vmatprep.subr.mxu0 %v792
        %1231 = vmatpush1.msra.mxu0 %v791
        %1232 = vmatprep.subr.mxu0 %v798
        %1233 = vmatpush1.msra.mxu0 %v797
        %1234 = vmatprep.subr.mxu0 %v804
        %1235 = vmatpush1.msra.mxu0 %v803
        %1236 = vmatprep.subr.mxu0 %v810
        %1237 = vmatpush1.msra.mxu0 %v809
        %1238 = vmatprep.subr.mxu0 %v816
        %1239 = vmatpush1.msra.mxu0 %v815
        %1240 = vmatprep.subr.mxu0 %v822
        %1241 = vmatpush1.msra.mxu0 %v821
        %1242 = vmatprep.subr.mxu0 %v828
        %1243 = vmatpush1.msra.mxu0 %v827
        %1244 = vmatprep.subr.mxu0 %v834
        %1245 = vmatpush1.msra.mxu0 %v833
        %1246 = vmatprep.subr.mxu0 %v840
        %1247 = vmatpush1.msra.mxu0 %v839
        %1248 = vmatprep.subr.mxu0 %v846
        %1249 = vmatpush1.msra.mxu0 %v845
        %1250 = vmatprep.subr.mxu0 %v852
        %1251 = vmatpush1.msra.mxu0 %v851
        %1252 = vmatprep.subr.mxu0 %v858
        %1253 = vmatpush1.msra.mxu0 %v857
        %1254 = vmatprep.subr.mxu0 %v864
        %1255 = vmatpush1.msra.mxu0 %v863
        %1256 = vmatprep.subr.mxu0 %v870
        %1257 = vmatpush1.msra.mxu0 %v869
        %1258 = vmatprep.subr.mxu0 %v876
        %1259 = vmatpush1.msra.mxu0 %v875
        %1260 = vmatprep.subr.mxu0 %v882
        %1261 = vmatpush1.msra.mxu0 %v881
        %1262 = vmatprep.subr.mxu0 %v888
        %1263 = vmatpush1.msra.mxu0 %v887
        %1264 = vmatprep.subr.mxu0 %v894
        %1265 = vmatpush1.msra.mxu0 %v893
        %1266 = vmatprep.subr.mxu0 %v900
        %1267 = vmatpush1.msra.mxu0 %v899
        %1268 = vmatprep.subr.mxu0 %v906
        %1269 = vmatpush1.msra.mxu0 %v905
        %1270 = vmatprep.subr.mxu0 %v912
        %1271 = vmatpush1.msra.mxu0 %v911
        %1272 = vmatprep.subr.mxu0 %v918
        %1273 = vmatpush1.msra.mxu0 %v917
        %1274 = vmatprep.subr.mxu0 %v924
        %1275 = vmatpush1.msra.mxu0 %v923
        %1276 = vmatprep.subr.mxu0 %v930
        %1277 = vmatpush1.msra.mxu0 %v929
        %1278 = vmatprep.subr.mxu0 %v936
        %1279 = vmatpush1.msra.mxu0 %v935
        %1280 = vmatprep.subr.mxu0 %v942
        %1281 = vmatpush1.msra.mxu0 %v941
        %1282 = vmatprep.subr.mxu0 %v948
        %1283 = vmatpush1.msra.mxu0 %v947
        %1284 = vmatprep.subr.mxu0 %v954
        %1285 = vmatpush1.msra.mxu0 %v953
        %1286 = vmatprep.mubr.f32.mxu0 %v182
        %1287 = vmatmul.mubr.f32.gmra.mrb[0].mxu0 %v181
        %v1288 = vpop.f32.mrb[0].mxu0
        %v1289 = vadd.f32 %v1212, %v1288
        %v1290 = vpop.f32.mrb[0].mxu0
        %v1291 = vadd.f32 %v1214, %v1290
        %1292 = vmatprep.mubr.f32.mxu0 %v190
        %1293 = vmatmul.mubr.f32.gmra.mrb[0].mxu0 %v189
        %v1294 = vpop.f32.mrb[0].mxu0
        %v1295 = vadd.f32 %v1218, %v1294
        %v1296 = vpop.f32.mrb[0].mxu0
        %v1297 = vadd.f32 %v1220, %v1296
        %1298 = vdwg.mxu0
        %1299 = vmatprep.subr.mxu0 %v194
        %1300 = vmatpush1.msra.mxu0 %v193
        %1301 = vmatprep.subr.mxu0 %v200
        %1302 = vmatpush1.msra.mxu0 %v199
        %1303 = vmatprep.subr.mxu0 %v206
        %1304 = vmatpush1.msra.mxu0 %v205
        %1305 = vmatprep.subr.mxu0 %v212
        %1306 = vmatpush1.msra.mxu0 %v211
        %1307 = vmatprep.subr.mxu0 %v218
        %1308 = vmatpush1.msra.mxu0 %v217
        %1309 = vmatprep.subr.mxu0 %v224
        %1310 = vmatpush1.msra.mxu0 %v223
        %1311 = vmatprep.subr.mxu0 %v230
        %1312 = vmatpush1.msra.mxu0 %v229
        %1313 = vmatprep.subr.mxu0 %v236
        %1314 = vmatpush1.msra.mxu0 %v235
        %1315 = vmatprep.subr.mxu0 %v242
        %1316 = vmatpush1.msra.mxu0 %v241
        %1317 = vmatprep.subr.mxu0 %v248
        %1318 = vmatpush1.msra.mxu0 %v247
        %1319 = vmatprep.subr.mxu0 %v254
        %1320 = vmatpush1.msra.mxu0 %v253
        %1321 = vmatprep.subr.mxu0 %v260
        %1322 = vmatpush1.msra.mxu0 %v259
        %1323 = vmatprep.subr.mxu0 %v266
        %1324 = vmatpush1.msra.mxu0 %v265
        %1325 = vmatprep.subr.mxu0 %v272
        %1326 = vmatpush1.msra.mxu0 %v271
        %1327 = vmatprep.subr.mxu0 %v278
        %1328 = vmatpush1.msra.mxu0 %v277
        %1329 = vmatprep.subr.mxu0 %v284
        %1330 = vmatpush1.msra.mxu0 %v283
        %1331 = vmatprep.subr.mxu0 %v290
        %1332 = vmatpush1.msra.mxu0 %v289
        %1333 = vmatprep.subr.mxu0 %v296
        %1334 = vmatpush1.msra.mxu0 %v295
        %1335 = vmatprep.subr.mxu0 %v302
        %1336 = vmatpush1.msra.mxu0 %v301
        %1337 = vmatprep.subr.mxu0 %v308
        %1338 = vmatpush1.msra.mxu0 %v307
        %1339 = vmatprep.subr.mxu0 %v314
        %1340 = vmatpush1.msra.mxu0 %v313
        %1341 = vmatprep.subr.mxu0 %v320
        %1342 = vmatpush1.msra.mxu0 %v319
        %1343 = vmatprep.subr.mxu0 %v326
        %1344 = vmatpush1.msra.mxu0 %v325
        %1345 = vmatprep.subr.mxu0 %v332
        %1346 = vmatpush1.msra.mxu0 %v331
        %1347 = vmatprep.subr.mxu0 %v338
        %1348 = vmatpush1.msra.mxu0 %v337
        %1349 = vmatprep.subr.mxu0 %v344
        %1350 = vmatpush1.msra.mxu0 %v343
        %1351 = vmatprep.subr.mxu0 %v350
        %1352 = vmatpush1.msra.mxu0 %v349
        %1353 = vmatprep.subr.mxu0 %v356
        %1354 = vmatpush1.msra.mxu0 %v355
        %1355 = vmatprep.subr.mxu0 %v362
        %1356 = vmatpush1.msra.mxu0 %v361
        %1357 = vmatprep.subr.mxu0 %v368
        %1358 = vmatpush1.msra.mxu0 %v367
        %1359 = vmatprep.subr.mxu0 %v374
        %1360 = vmatpush1.msra.mxu0 %v373
        %1361 = vmatprep.subr.mxu0 %v380
        %1362 = vmatpush1.msra.mxu0 %v379
        %1363 = vmatprep.mubr.f32.mxu0 %v176
        %1364 = vmatmul.mubr.f32.gmra.mrb[0].mxu0 %v175
        %v1365 = vpop.f32.mrb[0].mxu0
        %v1366 = vadd.f32 %v972, %v1365
        %v1367 = vpop.f32.mrb[0].mxu0
        %v1368 = vadd.f32 %v976, %v1367
        %1369 = vmatprep.mubr.f32.mxu0 %v184
        %1370 = vmatmul.mubr.f32.gmra.mrb[0].mxu0 %v183
        %v1371 = vpop.f32.mrb[0].mxu0
        %v1372 = vadd.f32 %v972, %v1371
        %v1373 = vpop.f32.mrb[0].mxu0
        %v1374 = vadd.f32 %v976, %v1373
        %1375 = vdwg.mxu0
        %1376 = vmatprep.subr.mxu0 %v386
        %1377 = vmatpush1.msra.mxu0 %v385
        %1378 = vmatprep.subr.mxu0 %v392
        %1379 = vmatpush1.msra.mxu0 %v391
        %1380 = vmatprep.subr.mxu0 %v398
        %1381 = vmatpush1.msra.mxu0 %v397
        %1382 = vmatprep.subr.mxu0 %v404
        %1383 = vmatpush1.msra.mxu0 %v403
        %1384 = vmatprep.subr.mxu0 %v410
        %1385 = vmatpush1.msra.mxu0 %v409
        %1386 = vmatprep.subr.mxu0 %v416
        %1387 = vmatpush1.msra.mxu0 %v415
        %1388 = vmatprep.subr.mxu0 %v422
        %1389 = vmatpush1.msra.mxu0 %v421
        %1390 = vmatprep.subr.mxu0 %v428
        %1391 = vmatpush1.msra.mxu0 %v427
        %1392 = vmatprep.subr.mxu0 %v434
        %1393 = vmatpush1.msra.mxu0 %v433
        %1394 = vmatprep.subr.mxu0 %v440
        %1395 = vmatpush1.msra.mxu0 %v439
        %1396 = vmatprep.subr.mxu0 %v446
        %1397 = vmatpush1.msra.mxu0 %v445
        %1398 = vmatprep.subr.mxu0 %v452
        %1399 = vmatpush1.msra.mxu0 %v451
        %1400 = vmatprep.subr.mxu0 %v458
        %1401 = vmatpush1.msra.mxu0 %v457
        %1402 = vmatprep.subr.mxu0 %v464
        %1403 = vmatpush1.msra.mxu0 %v463
        %1404 = vmatprep.subr.mxu0 %v470
        %1405 = vmatpush1.msra.mxu0 %v469
        %1406 = vmatprep.subr.mxu0 %v476
        %1407 = vmatpush1.msra.mxu0 %v475
        %1408 = vmatprep.subr.mxu0 %v482
        %1409 = vmatpush1.msra.mxu0 %v481
        %1410 = vmatprep.subr.mxu0 %v488
        %1411 = vmatpush1.msra.mxu0 %v487
        %1412 = vmatprep.subr.mxu0 %v494
        %1413 = vmatpush1.msra.mxu0 %v493
        %1414 = vmatprep.subr.mxu0 %v500
        %1415 = vmatpush1.msra.mxu0 %v499
        %1416 = vmatprep.subr.mxu0 %v506
        %1417 = vmatpush1.msra.mxu0 %v505
        %1418 = vmatprep.subr.mxu0 %v512
        %1419 = vmatpush1.msra.mxu0 %v511
        %1420 = vmatprep.subr.mxu0 %v518
        %1421 = vmatpush1.msra.mxu0 %v517
        %1422 = vmatprep.subr.mxu0 %v524
        %1423 = vmatpush1.msra.mxu0 %v523
        %1424 = vmatprep.subr.mxu0 %v530
        %1425 = vmatpush1.msra.mxu0 %v529
        %1426 = vmatprep.subr.mxu0 %v536
        %1427 = vmatpush1.msra.mxu0 %v535
        %1428 = vmatprep.subr.mxu0 %v542
        %1429 = vmatpush1.msra.mxu0 %v541
        %1430 = vmatprep.subr.mxu0 %v548
        %1431 = vmatpush1.msra.mxu0 %v547
        %1432 = vmatprep.subr.mxu0 %v554
        %1433 = vmatpush1.msra.mxu0 %v553
        %1434 = vmatprep.subr.mxu0 %v560
        %1435 = vmatpush1.msra.mxu0 %v559
        %1436 = vmatprep.subr.mxu0 %v566
        %1437 = vmatpush1.msra.mxu0 %v565
        %1438 = vmatprep.subr.mxu0 %v572
        %1439 = vmatpush1.msra.mxu0 %v571
        %1440 = vmatprep.mubr.f32.mxu0 %v178
        %1441 = vmatmul.mubr.f32.gmra.mrb[0].mxu0 %v177
        %v1442 = vpop.f32.mrb[0].mxu0
        %v1443 = vadd.f32 %v1366, %v1442
        %v1444 = vpop.f32.mrb[0].mxu0
        %v1445 = vadd.f32 %v1368, %v1444
        %1446 = vmatprep.mubr.f32.mxu0 %v186
        %1447 = vmatmul.mubr.f32.gmra.mrb[0].mxu0 %v185
        %v1448 = vpop.f32.mrb[0].mxu0
        %v1449 = vadd.f32 %v1372, %v1448
        %v1450 = vpop.f32.mrb[0].mxu0
        %v1451 = vadd.f32 %v1374, %v1450
        %1452 = vdwg.mxu0
        %1453 = vmatprep.subr.mxu0 %v578
        %1454 = vmatpush1.msra.mxu0 %v577
        %1455 = vmatprep.subr.mxu0 %v584
        %1456 = vmatpush1.msra.mxu0 %v583
        %1457 = vmatprep.subr.mxu0 %v590
        %1458 = vmatpush1.msra.mxu0 %v589
        %1459 = vmatprep.subr.mxu0 %v596
        %1460 = vmatpush1.msra.mxu0 %v595
        %1461 = vmatprep.subr.mxu0 %v602
        %1462 = vmatpush1.msra.mxu0 %v601
        %1463 = vmatprep.subr.mxu0 %v608
        %1464 = vmatpush1.msra.mxu0 %v607
        %1465 = vmatprep.subr.mxu0 %v614
        %1466 = vmatpush1.msra.mxu0 %v613
        %1467 = vmatprep.subr.mxu0 %v620
        %1468 = vmatpush1.msra.mxu0 %v619
        %1469 = vmatprep.subr.mxu0 %v626
        %1470 = vmatpush1.msra.mxu0 %v625
        %1471 = vmatprep.subr.mxu0 %v632
        %1472 = vmatpush1.msra.mxu0 %v631
        %1473 = vmatprep.subr.mxu0 %v638
        %1474 = vmatpush1.msra.mxu0 %v637
        %1475 = vmatprep.subr.mxu0 %v644
        %1476 = vmatpush1.msra.mxu0 %v643
        %1477 = vmatprep.subr.mxu0 %v650
        %1478 = vmatpush1.msra.mxu0 %v649
        %1479 = vmatprep.subr.mxu0 %v656
        %1480 = vmatpush1.msra.mxu0 %v655
        %1481 = vmatprep.subr.mxu0 %v662
        %1482 = vmatpush1.msra.mxu0 %v661
        %1483 = vmatprep.subr.mxu0 %v668
        %1484 = vmatpush1.msra.mxu0 %v667
        %1485 = vmatprep.subr.mxu0 %v674
        %1486 = vmatpush1.msra.mxu0 %v673
        %1487 = vmatprep.subr.mxu0 %v680
        %1488 = vmatpush1.msra.mxu0 %v679
        %1489 = vmatprep.subr.mxu0 %v686
        %1490 = vmatpush1.msra.mxu0 %v685
        %1491 = vmatprep.subr.mxu0 %v692
        %1492 = vmatpush1.msra.mxu0 %v691
        %1493 = vmatprep.subr.mxu0 %v698
        %1494 = vmatpush1.msra.mxu0 %v697
        %1495 = vmatprep.subr.mxu0 %v704
        %1496 = vmatpush1.msra.mxu0 %v703
        %1497 = vmatprep.subr.mxu0 %v710
        %1498 = vmatpush1.msra.mxu0 %v709
        %1499 = vmatprep.subr.mxu0 %v716
        %1500 = vmatpush1.msra.mxu0 %v715
        %1501 = vmatprep.subr.mxu0 %v722
        %1502 = vmatpush1.msra.mxu0 %v721
        %1503 = vmatprep.subr.mxu0 %v728
        %1504 = vmatpush1.msra.mxu0 %v727
        %1505 = vmatprep.subr.mxu0 %v734
        %1506 = vmatpush1.msra.mxu0 %v733
        %1507 = vmatprep.subr.mxu0 %v740
        %1508 = vmatpush1.msra.mxu0 %v739
        %1509 = vmatprep.subr.mxu0 %v746
        %1510 = vmatpush1.msra.mxu0 %v745
        %1511 = vmatprep.subr.mxu0 %v752
        %1512 = vmatpush1.msra.mxu0 %v751
        %1513 = vmatprep.subr.mxu0 %v758
        %1514 = vmatpush1.msra.mxu0 %v757
        %1515 = vmatprep.subr.mxu0 %v764
        %1516 = vmatpush1.msra.mxu0 %v763
        %1517 = vmatprep.mubr.f32.mxu0 %v180
        %1518 = vmatmul.mubr.f32.gmra.mrb[0].mxu0 %v179
        %v1519 = vpop.f32.mrb[0].mxu0
        %v1520 = vadd.f32 %v1443, %v1519
        %v1521 = vpop.f32.mrb[0].mxu0
        %v1522 = vadd.f32 %v1445, %v1521
        %1523 = vmatprep.mubr.f32.mxu0 %v188
        %1524 = vmatmul.mubr.f32.gmra.mrb[0].mxu0 %v187
        %v1525 = vpop.f32.mrb[0].mxu0
        %v1526 = vadd.f32 %v1449, %v1525
        %v1527 = vpop.f32.mrb[0].mxu0
        %v1528 = vadd.f32 %v1451, %v1527
        %1529 = vdwg.mxu0
        %1530 = vmatprep.subr.mxu0 %v770
        %1531 = vmatpush1.msra.mxu0 %v769
        %1532 = vmatprep.subr.mxu0 %v776
        %1533 = vmatpush1.msra.mxu0 %v775
        %1534 = vmatprep.subr.mxu0 %v782
        %1535 = vmatpush1.msra.mxu0 %v781
        %1536 = vmatprep.subr.mxu0 %v788
        %1537 = vmatpush1.msra.mxu0 %v787
        %1538 = vmatprep.subr.mxu0 %v794
        %1539 = vmatpush1.msra.mxu0 %v793
        %1540 = vmatprep.subr.mxu0 %v800
        %1541 = vmatpush1.msra.mxu0 %v799
        %1542 = vmatprep.subr.mxu0 %v806
        %1543 = vmatpush1.msra.mxu0 %v805
        %1544 = vmatprep.subr.mxu0 %v812
        %1545 = vmatpush1.msra.mxu0 %v811
        %1546 = vmatprep.subr.mxu0 %v818
        %1547 = vmatpush1.msra.mxu0 %v817
        %1548 = vmatprep.subr.mxu0 %v824
        %1549 = vmatpush1.msra.mxu0 %v823
        %1550 = vmatprep.subr.mxu0 %v830
        %1551 = vmatpush1.msra.mxu0 %v829
        %1552 = vmatprep.subr.mxu0 %v836
        %1553 = vmatpush1.msra.mxu0 %v835
        %1554 = vmatprep.subr.mxu0 %v842
        %1555 = vmatpush1.msra.mxu0 %v841
        %1556 = vmatprep.subr.mxu0 %v848
        %1557 = vmatpush1.msra.mxu0 %v847
        %1558 = vmatprep.subr.mxu0 %v854
        %1559 = vmatpush1.msra.mxu0 %v853
        %1560 = vmatprep.subr.mxu0 %v860
        %1561 = vmatpush1.msra.mxu0 %v859
        %1562 = vmatprep.subr.mxu0 %v866
        %1563 = vmatpush1.msra.mxu0 %v865
        %1564 = vmatprep.subr.mxu0 %v872
        %1565 = vmatpush1.msra.mxu0 %v871
        %1566 = vmatprep.subr.mxu0 %v878
        %1567 = vmatpush1.msra.mxu0 %v877
        %1568 = vmatprep.subr.mxu0 %v884
        %1569 = vmatpush1.msra.mxu0 %v883
        %1570 = vmatprep.subr.mxu0 %v890
        %1571 = vmatpush1.msra.mxu0 %v889
        %1572 = vmatprep.subr.mxu0 %v896
        %1573 = vmatpush1.msra.mxu0 %v895
        %1574 = vmatprep.subr.mxu0 %v902
        %1575 = vmatpush1.msra.mxu0 %v901
        %1576 = vmatprep.subr.mxu0 %v908
        %1577 = vmatpush1.msra.mxu0 %v907
        %1578 = vmatprep.subr.mxu0 %v914
        %1579 = vmatpush1.msra.mxu0 %v913
        %1580 = vmatprep.subr.mxu0 %v920
        %1581 = vmatpush1.msra.mxu0 %v919
        %1582 = vmatprep.subr.mxu0 %v926
        %1583 = vmatpush1.msra.mxu0 %v925
        %1584 = vmatprep.subr.mxu0 %v932
        %1585 = vmatpush1.msra.mxu0 %v931
        %1586 = vmatprep.subr.mxu0 %v938
        %1587 = vmatpush1.msra.mxu0 %v937
        %1588 = vmatprep.subr.mxu0 %v944
        %1589 = vmatpush1.msra.mxu0 %v943
        %1590 = vmatprep.subr.mxu0 %v950
        %1591 = vmatpush1.msra.mxu0 %v949
        %1592 = vmatprep.subr.mxu0 %v956
        %1593 = vmatpush1.msra.mxu0 %v955
        %1594 = vmatprep.mubr.f32.mxu0 %v182
        %1595 = vmatmul.mubr.f32.gmra.mrb[0].mxu0 %v181
        %v1596 = vpop.f32.mrb[0].mxu0
        %v1597 = vadd.f32 %v1520, %v1596
        %v1598 = vpop.f32.mrb[0].mxu0
        %v1599 = vadd.f32 %v1522, %v1598
        %1600 = vmatprep.mubr.f32.mxu0 %v190
        %1601 = vmatmul.mubr.f32.gmra.mrb[0].mxu0 %v189
        %v1602 = vpop.f32.mrb[0].mxu0
        %v1603 = vadd.f32 %v1526, %v1602
        %v1604 = vpop.f32.mrb[0].mxu0
        %v1605 = vadd.f32 %v1528, %v1604
        %1606 = vdwg.mxu0
        %1607 = vmatprep.subr.mxu0 %v196
        %1608 = vmatpush1.msra.mxu0 %v195
        %1609 = vmatprep.subr.mxu0 %v202
        %1610 = vmatpush1.msra.mxu0 %v201
        %1611 = vmatprep.subr.mxu0 %v208
        %1612 = vmatpush1.msra.mxu0 %v207
        %1613 = vmatprep.subr.mxu0 %v214
        %1614 = vmatpush1.msra.mxu0 %v213
        %1615 = vmatprep.subr.mxu0 %v220
        %1616 = vmatpush1.msra.mxu0 %v219
        %1617 = vmatprep.subr.mxu0 %v226
        %1618 = vmatpush1.msra.mxu0 %v225
        %1619 = vmatprep.subr.mxu0 %v232
        %1620 = vmatpush1.msra.mxu0 %v231
        %1621 = vmatprep.subr.mxu0 %v238
        %1622 = vmatpush1.msra.mxu0 %v237
        %1623 = vmatprep.subr.mxu0 %v244
        %1624 = vmatpush1.msra.mxu0 %v243
        %1625 = vmatprep.subr.mxu0 %v250
        %1626 = vmatpush1.msra.mxu0 %v249
        %1627 = vmatprep.subr.mxu0 %v256
        %1628 = vmatpush1.msra.mxu0 %v255
        %1629 = vmatprep.subr.mxu0 %v262
        %1630 = vmatpush1.msra.mxu0 %v261
        %1631 = vmatprep.subr.mxu0 %v268
        %1632 = vmatpush1.msra.mxu0 %v267
        %1633 = vmatprep.subr.mxu0 %v274
        %1634 = vmatpush1.msra.mxu0 %v273
        %1635 = vmatprep.subr.mxu0 %v280
        %1636 = vmatpush1.msra.mxu0 %v279
        %1637 = vmatprep.subr.mxu0 %v286
        %1638 = vmatpush1.msra.mxu0 %v285
        %1639 = vmatprep.subr.mxu0 %v292
        %1640 = vmatpush1.msra.mxu0 %v291
        %1641 = vmatprep.subr.mxu0 %v298
        %1642 = vmatpush1.msra.mxu0 %v297
        %1643 = vmatprep.subr.mxu0 %v304
        %1644 = vmatpush1.msra.mxu0 %v303
        %1645 = vmatprep.subr.mxu0 %v310
        %1646 = vmatpush1.msra.mxu0 %v309
        %1647 = vmatprep.subr.mxu0 %v316
        %1648 = vmatpush1.msra.mxu0 %v315
        %1649 = vmatprep.subr.mxu0 %v322
        %1650 = vmatpush1.msra.mxu0 %v321
        %1651 = vmatprep.subr.mxu0 %v328
        %1652 = vmatpush1.msra.mxu0 %v327
        %1653 = vmatprep.subr.mxu0 %v334
        %1654 = vmatpush1.msra.mxu0 %v333
        %1655 = vmatprep.subr.mxu0 %v340
        %1656 = vmatpush1.msra.mxu0 %v339
        %1657 = vmatprep.subr.mxu0 %v346
        %1658 = vmatpush1.msra.mxu0 %v345
        %1659 = vmatprep.subr.mxu0 %v352
        %1660 = vmatpush1.msra.mxu0 %v351
        %1661 = vmatprep.subr.mxu0 %v358
        %1662 = vmatpush1.msra.mxu0 %v357
        %1663 = vmatprep.subr.mxu0 %v364
        %1664 = vmatpush1.msra.mxu0 %v363
        %1665 = vmatprep.subr.mxu0 %v370
        %1666 = vmatpush1.msra.mxu0 %v369
        %1667 = vmatprep.subr.mxu0 %v376
        %1668 = vmatpush1.msra.mxu0 %v375
        %1669 = vmatprep.subr.mxu0 %v382
        %1670 = vmatpush1.msra.mxu0 %v381
        %1671 = vmatprep.mubr.f32.mxu0 %v176
        %1672 = vmatmul.mubr.f32.gmra.mrb[0].mxu0 %v175
        %v1673 = vpop.f32.mrb[0].mxu0
        %v1674 = vadd.f32 %v980, %v1673
        %v1675 = vpop.f32.mrb[0].mxu0
        %v1676 = vadd.f32 %v984, %v1675
        %1677 = vmatprep.mubr.f32.mxu0 %v184
        %1678 = vmatmul.mubr.f32.gmra.mrb[0].mxu0 %v183
        %v1679 = vpop.f32.mrb[0].mxu0
        %v1680 = vadd.f32 %v980, %v1679
        %v1681 = vpop.f32.mrb[0].mxu0
        %v1682 = vadd.f32 %v984, %v1681
        %1683 = vdwg.mxu0
        %1684 = vmatprep.subr.mxu0 %v388
        %1685 = vmatpush1.msra.mxu0 %v387
        %1686 = vmatprep.subr.mxu0 %v394
        %1687 = vmatpush1.msra.mxu0 %v393
        %1688 = vmatprep.subr.mxu0 %v400
        %1689 = vmatpush1.msra.mxu0 %v399
        %1690 = vmatprep.subr.mxu0 %v406
        %1691 = vmatpush1.msra.mxu0 %v405
        %1692 = vmatprep.subr.mxu0 %v412
        %1693 = vmatpush1.msra.mxu0 %v411
        %1694 = vmatprep.subr.mxu0 %v418
        %1695 = vmatpush1.msra.mxu0 %v417
        %1696 = vmatprep.subr.mxu0 %v424
        %1697 = vmatpush1.msra.mxu0 %v423
        %1698 = vmatprep.subr.mxu0 %v430
        %1699 = vmatpush1.msra.mxu0 %v429
        %1700 = vmatprep.subr.mxu0 %v436
        %1701 = vmatpush1.msra.mxu0 %v435
        %1702 = vmatprep.subr.mxu0 %v442
        %1703 = vmatpush1.msra.mxu0 %v441
        %1704 = vmatprep.subr.mxu0 %v448
        %1705 = vmatpush1.msra.mxu0 %v447
        %1706 = vmatprep.subr.mxu0 %v454
        %1707 = vmatpush1.msra.mxu0 %v453
        %1708 = vmatprep.subr.mxu0 %v460
        %1709 = vmatpush1.msra.mxu0 %v459
        %1710 = vmatprep.subr.mxu0 %v466
        %1711 = vmatpush1.msra.mxu0 %v465
        %1712 = vmatprep.subr.mxu0 %v472
        %1713 = vmatpush1.msra.mxu0 %v471
        %1714 = vmatprep.subr.mxu0 %v478
        %1715 = vmatpush1.msra.mxu0 %v477
        %1716 = vmatprep.subr.mxu0 %v484
        %1717 = vmatpush1.msra.mxu0 %v483
        %1718 = vmatprep.subr.mxu0 %v490
        %1719 = vmatpush1.msra.mxu0 %v489
        %1720 = vmatprep.subr.mxu0 %v496
        %1721 = vmatpush1.msra.mxu0 %v495
        %1722 = vmatprep.subr.mxu0 %v502
        %1723 = vmatpush1.msra.mxu0 %v501
        %1724 = vmatprep.subr.mxu0 %v508
        %1725 = vmatpush1.msra.mxu0 %v507
        %1726 = vmatprep.subr.mxu0 %v514
        %1727 = vmatpush1.msra.mxu0 %v513
        %1728 = vmatprep.subr.mxu0 %v520
        %1729 = vmatpush1.msra.mxu0 %v519
        %1730 = vmatprep.subr.mxu0 %v526
        %1731 = vmatpush1.msra.mxu0 %v525
        %1732 = vmatprep.subr.mxu0 %v532
        %1733 = vmatpush1.msra.mxu0 %v531
        %1734 = vmatprep.subr.mxu0 %v538
        %1735 = vmatpush1.msra.mxu0 %v537
        %1736 = vmatprep.subr.mxu0 %v544
        %1737 = vmatpush1.msra.mxu0 %v543
        %1738 = vmatprep.subr.mxu0 %v550
        %1739 = vmatpush1.msra.mxu0 %v549
        %1740 = vmatprep.subr.mxu0 %v556
        %1741 = vmatpush1.msra.mxu0 %v555
        %1742 = vmatprep.subr.mxu0 %v562
        %1743 = vmatpush1.msra.mxu0 %v561
        %1744 = vmatprep.subr.mxu0 %v568
        %1745 = vmatpush1.msra.mxu0 %v567
        %1746 = vmatprep.subr.mxu0 %v574
        %1747 = vmatpush1.msra.mxu0 %v573
        %1748 = vmatprep.mubr.f32.mxu0 %v178
        %1749 = vmatmul.mubr.f32.gmra.mrb[0].mxu0 %v177
        %v1750 = vpop.f32.mrb[0].mxu0
        %v1751 = vadd.f32 %v1674, %v1750
        %v1752 = vpop.f32.mrb[0].mxu0
        %v1753 = vadd.f32 %v1676, %v1752
        %1754 = vmatprep.mubr.f32.mxu0 %v186
        %1755 = vmatmul.mubr.f32.gmra.mrb[0].mxu0 %v185
        %v1756 = vpop.f32.mrb[0].mxu0
        %v1757 = vadd.f32 %v1680, %v1756
        %v1758 = vpop.f32.mrb[0].mxu0
        %v1759 = vadd.f32 %v1682, %v1758
        %1760 = vdwg.mxu0
        %1761 = vmatprep.subr.mxu0 %v580
        %1762 = vmatpush1.msra.mxu0 %v579
        %1763 = vmatprep.subr.mxu0 %v586
        %1764 = vmatpush1.msra.mxu0 %v585
        %1765 = vmatprep.subr.mxu0 %v592
        %1766 = vmatpush1.msra.mxu0 %v591
        %1767 = vmatprep.subr.mxu0 %v598
        %1768 = vmatpush1.msra.mxu0 %v597
        %1769 = vmatprep.subr.mxu0 %v604
        %1770 = vmatpush1.msra.mxu0 %v603
        %1771 = vmatprep.subr.mxu0 %v610
        %1772 = vmatpush1.msra.mxu0 %v609
        %1773 = vmatprep.subr.mxu0 %v616
        %1774 = vmatpush1.msra.mxu0 %v615
        %1775 = vmatprep.subr.mxu0 %v622
        %1776 = vmatpush1.msra.mxu0 %v621
        %1777 = vmatprep.subr.mxu0 %v628
        %1778 = vmatpush1.msra.mxu0 %v627
        %1779 = vmatprep.subr.mxu0 %v634
        %1780 = vmatpush1.msra.mxu0 %v633
        %1781 = vmatprep.subr.mxu0 %v640
        %1782 = vmatpush1.msra.mxu0 %v639
        %1783 = vmatprep.subr.mxu0 %v646
        %1784 = vmatpush1.msra.mxu0 %v645
        %1785 = vmatprep.subr.mxu0 %v652
        %1786 = vmatpush1.msra.mxu0 %v651
        %1787 = vmatprep.subr.mxu0 %v658
        %1788 = vmatpush1.msra.mxu0 %v657
        %1789 = vmatprep.subr.mxu0 %v664
        %1790 = vmatpush1.msra.mxu0 %v663
        %1791 = vmatprep.subr.mxu0 %v670
        %1792 = vmatpush1.msra.mxu0 %v669
        %1793 = vmatprep.subr.mxu0 %v676
        %1794 = vmatpush1.msra.mxu0 %v675
        %1795 = vmatprep.subr.mxu0 %v682
        %1796 = vmatpush1.msra.mxu0 %v681
        %1797 = vmatprep.subr.mxu0 %v688
        %1798 = vmatpush1.msra.mxu0 %v687
        %1799 = vmatprep.subr.mxu0 %v694
        %1800 = vmatpush1.msra.mxu0 %v693
        %1801 = vmatprep.subr.mxu0 %v700
        %1802 = vmatpush1.msra.mxu0 %v699
        %1803 = vmatprep.subr.mxu0 %v706
        %1804 = vmatpush1.msra.mxu0 %v705
        %1805 = vmatprep.subr.mxu0 %v712
        %1806 = vmatpush1.msra.mxu0 %v711
        %1807 = vmatprep.subr.mxu0 %v718
        %1808 = vmatpush1.msra.mxu0 %v717
        %1809 = vmatprep.subr.mxu0 %v724
        %1810 = vmatpush1.msra.mxu0 %v723
        %1811 = vmatprep.subr.mxu0 %v730
        %1812 = vmatpush1.msra.mxu0 %v729
        %1813 = vmatprep.subr.mxu0 %v736
        %1814 = vmatpush1.msra.mxu0 %v735
        %1815 = vmatprep.subr.mxu0 %v742
        %1816 = vmatpush1.msra.mxu0 %v741
        %1817 = vmatprep.subr.mxu0 %v748
        %1818 = vmatpush1.msra.mxu0 %v747
        %1819 = vmatprep.subr.mxu0 %v754
        %1820 = vmatpush1.msra.mxu0 %v753
        %1821 = vmatprep.subr.mxu0 %v760
        %1822 = vmatpush1.msra.mxu0 %v759
        %1823 = vmatprep.subr.mxu0 %v766
        %1824 = vmatpush1.msra.mxu0 %v765
        %1825 = vmatprep.mubr.f32.mxu0 %v180
        %1826 = vmatmul.mubr.f32.gmra.mrb[0].mxu0 %v179
        %v1827 = vpop.f32.mrb[0].mxu0
        %v1828 = vadd.f32 %v1751, %v1827
        %v1829 = vpop.f32.mrb[0].mxu0
        %v1830 = vadd.f32 %v1753, %v1829
        %1831 = vmatprep.mubr.f32.mxu0 %v188
        %1832 = vmatmul.mubr.f32.gmra.mrb[0].mxu0 %v187
        %v1833 = vpop.f32.mrb[0].mxu0
        %v1834 = vadd.f32 %v1757, %v1833
        %v1835 = vpop.f32.mrb[0].mxu0
        %v1836 = vadd.f32 %v1759, %v1835
        %1837 = vdwg.mxu0
        %1838 = vmatprep.subr.mxu0 %v772
        %1839 = vmatpush1.msra.mxu0 %v771
        %1840 = vmatprep.subr.mxu0 %v778
        %1841 = vmatpush1.msra.mxu0 %v777
        %1842 = vmatprep.subr.mxu0 %v784
        %1843 = vmatpush1.msra.mxu0 %v783
        %1844 = vmatprep.subr.mxu0 %v790
        %1845 = vmatpush1.msra.mxu0 %v789
        %1846 = vmatprep.subr.mxu0 %v796
        %1847 = vmatpush1.msra.mxu0 %v795
        %1848 = vmatprep.subr.mxu0 %v802
        %1849 = vmatpush1.msra.mxu0 %v801
        %1850 = vmatprep.subr.mxu0 %v808
        %1851 = vmatpush1.msra.mxu0 %v807
        %1852 = vmatprep.subr.mxu0 %v814
        %1853 = vmatpush1.msra.mxu0 %v813
        %1854 = vmatprep.subr.mxu0 %v820
        %1855 = vmatpush1.msra.mxu0 %v819
        %1856 = vmatprep.subr.mxu0 %v826
        %1857 = vmatpush1.msra.mxu0 %v825
        %1858 = vmatprep.subr.mxu0 %v832
        %1859 = vmatpush1.msra.mxu0 %v831
        %1860 = vmatprep.subr.mxu0 %v838
        %1861 = vmatpush1.msra.mxu0 %v837
        %1862 = vmatprep.subr.mxu0 %v844
        %1863 = vmatpush1.msra.mxu0 %v843
        %1864 = vmatprep.subr.mxu0 %v850
        %1865 = vmatpush1.msra.mxu0 %v849
        %1866 = vmatprep.subr.mxu0 %v856
        %1867 = vmatpush1.msra.mxu0 %v855
        %1868 = vmatprep.subr.mxu0 %v862
        %1869 = vmatpush1.msra.mxu0 %v861
        %1870 = vmatprep.subr.mxu0 %v868
        %1871 = vmatpush1.msra.mxu0 %v867
        %1872 = vmatprep.subr.mxu0 %v874
        %1873 = vmatpush1.msra.mxu0 %v873
        %1874 = vmatprep.subr.mxu0 %v880
        %1875 = vmatpush1.msra.mxu0 %v879
        %1876 = vmatprep.subr.mxu0 %v886
        %1877 = vmatpush1.msra.mxu0 %v885
        %1878 = vmatprep.subr.mxu0 %v892
        %1879 = vmatpush1.msra.mxu0 %v891
        %1880 = vmatprep.subr.mxu0 %v898
        %1881 = vmatpush1.msra.mxu0 %v897
        %1882 = vmatprep.subr.mxu0 %v904
        %1883 = vmatpush1.msra.mxu0 %v903
        %1884 = vmatprep.subr.mxu0 %v910
        %1885 = vmatpush1.msra.mxu0 %v909
        %1886 = vmatprep.subr.mxu0 %v916
        %1887 = vmatpush1.msra.mxu0 %v915
        %1888 = vmatprep.subr.mxu0 %v922
        %1889 = vmatpush1.msra.mxu0 %v921
        %1890 = vmatprep.subr.mxu0 %v928
        %1891 = vmatpush1.msra.mxu0 %v927
        %1892 = vmatprep.subr.mxu0 %v934
        %1893 = vmatpush1.msra.mxu0 %v933
        %1894 = vmatprep.subr.mxu0 %v940
        %1895 = vmatpush1.msra.mxu0 %v939
        %1896 = vmatprep.subr.mxu0 %v946
        %1897 = vmatpush1.msra.mxu0 %v945
        %1898 = vmatprep.subr.mxu0 %v952
        %1899 = vmatpush1.msra.mxu0 %v951
        %1900 = vmatprep.subr.mxu0 %v958
        %1901 = vmatpush1.msra.mxu0 %v957
        %1902 = vmatprep.mubr.f32.mxu0 %v182
        %1903 = vmatmul.mubr.f32.gmra.mrb[0].mxu0 %v181
        %v1904 = vpop.f32.mrb[0].mxu0
        %v1905 = vadd.f32 %v1828, %v1904
        %v1906 = vpop.f32.mrb[0].mxu0
        %v1907 = vadd.f32 %v1830, %v1906
        %1908 = vmatprep.mubr.f32.mxu0 %v190
        %1909 = vmatmul.mubr.f32.gmra.mrb[0].mxu0 %v189
        %v1910 = vpop.f32.mrb[0].mxu0
        %v1911 = vadd.f32 %v1834, %v1910
        %v1912 = vpop.f32.mrb[0].mxu0
        %v1913 = vadd.f32 %v1836, %v1912
        %1914 = vdwg.mxu0
        %1915 = vst [vmem:[%s166] sm:$0xff] %v1289
        %1916 = vst [vmem:[%s166 + $0x8] sm:$0xff] %v1291
        %1917 = vst [vmem:[%s166 + $0x10] sm:$0xff] %v1597
        %1918 = vst [vmem:[%s166 + $0x18] sm:$0xff] %v1599
        %1919 = vst [vmem:[%s166 + $0x20] sm:$0xff] %v1905
        %1920 = vst [vmem:[%s166 + $0x28] sm:$0xff] %v1907
        %1921 = vst [vmem:[%s166 + $0x30] sm:$0xff] %v1295
        %1922 = vst [vmem:[%s166 + $0x38] sm:$0xff] %v1297
        %1923 = vst [vmem:[%s166 + $0x40] sm:$0xff] %v1603
        %1924 = vst [vmem:[%s166 + $0x48] sm:$0xff] %v1605
        %1925 = vst [vmem:[%s166 + $0x50] sm:$0xff] %v1911
        %1926 = vst [vmem:[%s166 + $0x58] sm:$0xff] %v1913
        %s1927 = sand.u32 %s93, 1
        %s1928 = scalar_lea.sflag [#allocation3], %s1927
        %s1929 = sand.u32 %s93, 1
        %s1930 = smul.addr %s1929, 96
        %s1931 = scalar_lea.vmem [#allocation2], %s1930
        // Predicated region
        $region33: #{_patch_embed_tokens.1} parent=31 // pred_check
          %p1932 = pneg %p103
        $region34: #{_patch_embed_tokens.1} parent=31 // pred_check_branch
          %1934 = sbr.rel (%p1932) target = $region36
        $region35: #{_patch_embed_tokens.1} parent=31 // pred_region
          %s1935 = smul.u32 2, %s17
          %s1937 = ssub.s32 1536, 1536
          %1938 = vsyncadd %s1928, %s1937
          %s1939 = smul.addr %s1935, 6
          %s1940 = smul.addr %s1939, 128
          %s1941 = scalar_lea.hbm %s3, %s1940
          %s1942 = sshll.u32 %s1931, 4
          %s1943 = int_to_ptr.vmem [resolvable:$true] %s1942
          %1948 = dma.vmem_to_hbm [thread:$0]  %s1943, 1536, %s1941, %s1928, 768, 768, 48
        $region36: #{_patch_embed_tokens.1} parent=31 // pred_fallthru
          _
      $region32: #{_patch_embed_tokens.1} parent=5 // pred_fallthru
        _
      %p1949 = scmp.le.s32.totalorder 2, %s12
      // Predicated region
      $region37: #{_patch_embed_tokens.1} parent=5 // pred_check
        %p1950 = pneg %p1949
      $region38: #{_patch_embed_tokens.1} parent=5 // pred_check_branch
        %1952 = sbr.rel (%p1950) target = $region40
      $region39: #{_patch_embed_tokens.1} parent=5 // pred_region
        %s1953 = ssub.s32 %s12, 2
        // Predicated region
        $region41: #{_patch_embed_tokens.1} parent=39 // pred_check
          %p1954 = pneg %p109
        $region42: #{_patch_embed_tokens.1} parent=39 // pred_check_branch
          %1956 = sbr.rel (%p1954) target = $region44
        $region43: #{_patch_embed_tokens.1} parent=39 // pred_region
          %s1957 = sand.u32 %s94, 1
          %s1958 = scalar_lea.sflag [#allocation3], %s1957
          %s1959 = sand.u32 %s94, 1
          %s1960 = smul.addr %s1959, 96
          %s1961 = scalar_lea.vmem [#allocation2], %s1960
          %1962 = dma.done %s1958, 1536
        $region44: #{_patch_embed_tokens.1} parent=39 // pred_fallthru
          _
      $region40: #{_patch_embed_tokens.1} parent=5 // pred_fallthru
        _
    $region6: #{_patch_embed_tokens.1} parent=1 // loop_footer
      %s16 = sadd.s32 1, %s12
    $region7: #{_patch_embed_tokens.1} parent=1 // loop_footer_branch
      %11 = sbr.rel target = $region3
    $region8: #{_patch_embed_tokens.1} parent=1 // loop_exit
      _
    %1963 = vsyncpa [#allocation3], 1
    %s1964 = scalar_lea.sflag [#allocation3], 1
    %1965 = vsyncpa %s1964, 1

</llo_original>
